<compile_context>
chip_gen: v6e
topology: v6e:2x2x1
jax: 0.10.0
libtpu: 0.0.40
codegen_flags: <defaults>
</compile_context>

<pallas_src>
import functools

import jax
import jax.numpy as jnp
from jax.experimental import pallas as pl
from jax.experimental.pallas import tpu as pltpu


# ----------------------------------------------------------------------------
# Model configuration (matches the PyTorch module instantiation)
# ----------------------------------------------------------------------------
SA_N_POINTS = [8, 4]
SA_N_SAMPLES = [[8], [8]]
SA_RADII = [[0.4], [0.8]]
SA_MLPS = [[[4, 16, 32]], [[32, 32, 64]]]   # feature channels (use_xyz adds +3)
USE_XYZ = True
BN_EPS = 1e-5


def _round_up(x, m):
    return ((x + m - 1) // m) * m


# ----------------------------------------------------------------------------
# Parameter packing: one VMEM slab per SA stage, static row offsets.
# ----------------------------------------------------------------------------
def pack_params(mats):
    """Vertically stack 2-D params into one slab; each block row-padded to 8."""
    width = max(int(m.shape[1]) for m in mats)
    rows, offs, chunks = 0, [], []
    for m in mats:
        r, c = int(m.shape[0]), int(m.shape[1])
        rp = _round_up(r, 8)
        offs.append((rows, r, c))
        chunks.append(jnp.pad(m, ((0, rp - r), (0, width - c))))
        rows += rp
    return jnp.concatenate(chunks, axis=0), tuple(offs)


def _pk_slice(pk_ref, off):
    o, r, c = off
    return pk_ref[o:o + r, 0:c]


# ----------------------------------------------------------------------------
# Pallas kernels: one SA scale = in-kernel gather + shared MLP + max-pool,
# optionally with the final nn.Linear fused as a single K = P*C dot.
# ----------------------------------------------------------------------------
def _make_sa_kernel(*, S, n_group, n_src, c_last, layer_offs, fc=None):
    """
    S         : nsample (max-pool reduction length).
    n_group   : rows per sample step (= B*P or P*B); rows = S * n_group.
    n_src     : number of source points across the batch (= B*N); one-hot width.
    c_last    : last MLP channel count.
    layer_offs: ((w_off, b_off), ...) static offsets into the packed param slab.
    fc        : None, or (B, P, out_c, wfc_off, bfc_off) to fuse the final Linear.
    """
    rows = S * n_group

    def gather_mlp_pool(idx_ref, pts_ref, ctr_ref, pk_ref):
        # --- in-kernel gather: one-hot matmul (one MXU push, no HBM grouped slab)
        cols = jax.lax.broadcasted_iota(jnp.int32, (rows, n_src), 1)
        onehot = jnp.where(idx_ref[...] == cols, 1.0, 0.0)          # [rows, n_src] f32
        # xyz centering folded in: centers operand is zero in the feature columns.
        h = jnp.dot(onehot, pts_ref[...],
                    preferred_element_type=jnp.float32) - ctr_ref[...]
        # --- shared MLP (eval-mode BN pre-folded into the weights at init)
        # TODO(synk): cast dot operands to bf16 on v6e/v7x once channels grow.
        for (w_off, b_off) in layer_offs:
            w = _pk_slice(pk_ref, w_off)
            b = _pk_slice(pk_ref, b_off)
            h = jnp.maximum(
                jnp.dot(h, w, preferred_element_type=jnp.float32) + b, 0.0)
        # --- max over nsample: S aligned chunks of n_group rows (n_group % 8 == 0)
        acc = h[0:n_group, :]
        for s in range(1, S):
            acc = jnp.maximum(acc, h[s * n_group:(s + 1) * n_group, :])
        return acc                                                   # [n_group, c_last]

    if fc is None:
        def kernel(idx_ref, pts_ref, ctr_ref, pk_ref, out_ref):
            out_ref[...] = gather_mlp_pool(idx_ref, pts_ref, ctr_ref, pk_ref)

        def run(idx_rows, pts, ctr_rows, packed):
            return pl.pallas_call(
                kernel,
                out_shape=jax.ShapeDtypeStruct((n_group, c_last), jnp.float32),
            )(idx_rows, pts, ctr_rows, packed)

        return run

    B, P, out_c, wfc_off, bfc_off = fc

    def kernel_fc(idx_ref, pts_ref, ctr_ref, pk_ref, out_ref, fcin_ref):
        # rows are (s, p, b)-major -> pooled acc rows are (p, b)-major.
        acc = gather_mlp_pool(idx_ref, pts_ref, ctr_ref, pk_ref)    # [P*B, c_last]
        # Flatten pooled features to [B, P*c_last] via static column writes
        # (column index = p*C + c, matching the permuted FC weight rows).
        for p in range(P):
            fcin_ref[:, p * c_last:(p + 1) * c_last] = acc[p * B:(p + 1) * B, :]
        wfc = _pk_slice(pk_ref, wfc_off)                             # [P*c_last, out_c]
        bfc = _pk_slice(pk_ref, bfc_off)                             # [1, out_c]
        out_ref[...] = bfc + jnp.dot(fcin_ref[...], wfc,
                                     preferred_element_type=jnp.float32)

    def run(idx_rows, pts, ctr_rows, packed):
        return pl.pallas_call(
            kernel_fc,
            out_shape=jax.ShapeDtypeStruct((B, out_c), jnp.float32),
            scratch_shapes=[pltpu.VMEM((B, P * c_last), jnp.float32)],
        )(idx_rows, pts, ctr_rows, packed)

    return run


# ----------------------------------------------------------------------------
# Plain-JAX glue (sequential / argmax index selection — no clean Pallas hot path)
# ----------------------------------------------------------------------------
def square_distance(a, b):
    # a: [B, M, 3], b: [B, N, 3] -> [B, M, N]
    return jnp.sum((a[:, :, None, :] - b[:, None, :, :]) ** 2, axis=-1)


def farthest_point_sample(xyz, npoint):
    # xyz: [B, N, 3] -> idx [B, npoint]  (matches pointnet2 CUDA FPS: start at 0)
    B, N, _ = xyz.shape

    def body(i, state):
        idxs, dists, last = state
        cur = xyz[jnp.arange(B), last]                        # [B, 3]
        d = jnp.sum((xyz - cur[:, None, :]) ** 2, axis=-1)    # [B, N]
        dists = jnp.minimum(dists, d)
        nxt = jnp.argmax(dists, axis=-1).astype(jnp.int32)
        idxs = idxs.at[:, i].set(nxt)
        return idxs, dists, nxt

    idxs = jnp.zeros((B, npoint), jnp.int32)
    dists = jnp.full((B, N), 1e10, jnp.float32)
    last = jnp.zeros((B,), jnp.int32)
    idxs, _, _ = jax.lax.fori_loop(1, npoint, body, (idxs, dists, last))
    return idxs


def ball_query(radius, nsample, xyz, new_xyz):
    # pointnet2 ball_query semantics: first `nsample` in-radius indices (original
    # order); remaining slots filled with the first found index; zeros if none.
    B, N, _ = xyz.shape
    d2 = square_distance(new_xyz, xyz)                              # [B, P, N]
    mask = d2 < radius ** 2
    rank = jnp.cumsum(mask.astype(jnp.int32), axis=-1) - 1
    order = jnp.where(mask, rank, N)
    first_idx = jnp.argmax(mask, axis=-1).astype(jnp.int32)         # 0 if none
    slots = jnp.arange(nsample)
    match = order[:, :, None, :] == slots[None, None, :, None]      # [B,P,S,N]
    found = jnp.any(match, axis=-1)
    idx_s = jnp.argmax(match, axis=-1).astype(jnp.int32)
    return jnp.where(found, idx_s, first_idx[:, :, None])           # [B, P, S]


# ----------------------------------------------------------------------------
# Parameter init (eval-mode BN folded, FC weight permuted + flattened, packed)
# ----------------------------------------------------------------------------
def init_params(key):
    stages = []
    n_sa = len(SA_N_POINTS)
    for i in range(n_sa):
        scales = []
        for s_i, mlp in enumerate(SA_MLPS[i]):
            chans = [mlp[0] + (3 if USE_XYZ else 0)] + list(mlp[1:])
            cin_pad = _round_up(chans[0], 8)        # 7 -> 8, 35 -> 40 (review item)
            mats = []
            for l in range(len(chans) - 1):
                key, k1, k2, k3 = jax.random.split(key, 4)
                c_in, c_out = chans[l], chans[l + 1]
                w = jax.random.normal(k1, (c_in, c_out), jnp.float32) * (c_in ** -0.5)
                gamma = 1.0 + 0.1 * jax.random.normal(k2, (c_out,), jnp.float32)
                beta = 0.1 * jax.random.normal(k3, (c_out,), jnp.float32)
                run_mean = jnp.zeros((c_out,), jnp.float32)
                run_var = jnp.ones((c_out,), jnp.float32)
                # fold eval-mode BatchNorm (conv has no bias when bn=True):
                #   y = (x@w)*s + b  ==  x @ (w*s) + b
                sc = gamma / jnp.sqrt(run_var + BN_EPS)
                b = beta - run_mean * sc
                wf = w * sc[None, :]
                if l == 0:
                    wf = jnp.pad(wf, ((0, cin_pad - c_in), (0, 0)))   # padded-K zero rows
                mats.append(wf)
                mats.append(b.reshape(1, -1))

            scale = {"chans": chans, "cin_pad": cin_pad}
            is_last = (i == n_sa - 1) and (s_i == 0)
            if is_last:
                assert len(SA_MLPS[i]) == 1, "fused-FC path assumes single-scale last SA"
                out_c = chans[-1]
                p_last = SA_N_POINTS[-1]
                fc_in = p_last * out_c
                key, k1, k2 = jax.random.split(key, 3)
                # torch fc weight^T is [fc_in, out] with row index c*P + p (torch
                # flattens channel-major [B, C, P]).  Permute once into p*C + c row
                # order and flatten to [P*C, out] so the fused kernel does ONE
                # K = P*C dot on the (b,p)-major pooled flatten.
                fc_w_t = jax.random.normal(k1, (fc_in, out_c), jnp.float32) * (fc_in ** -0.5)
                wfc = jnp.transpose(fc_w_t.reshape(out_c, p_last, out_c),
                                    (1, 0, 2)).reshape(fc_in, out_c)
                bfc = (0.1 * jax.random.normal(k2, (out_c,), jnp.float32)).reshape(1, -1)
                mats.append(wfc)
                mats.append(bfc)

            packed, offs = pack_params(mats)
            n_layers = len(chans) - 1
            scale["layer_offs"] = tuple(
                (offs[2 * l], offs[2 * l + 1]) for l in range(n_layers))
            scale["packed"] = packed
            if is_last:
                scale["out_c"] = chans[-1]
                scale["wfc_off"] = offs[2 * n_layers]
                scale["bfc_off"] = offs[2 * n_layers + 1]
            scales.append(scale)
        stages.append(scales)
    return {"stages": stages}


# ----------------------------------------------------------------------------
# PointNet++ forward
# ----------------------------------------------------------------------------
def pointnet_pp_forward(pc, params):
    """pc: [B, N_points, 3 + C]  ->  [B, SA_MLPS[-1][-1][-1]]"""
    xyz = pc[..., 0:3]
    feats = pc[..., 3:] if pc.shape[-1] > 3 else None     # point-major [B, N, C]
    B = pc.shape[0]
    n_sa = len(SA_N_POINTS)

    for i in range(n_sa):
        P = SA_N_POINTS[i]
        N = xyz.shape[1]
        last = (i == n_sa - 1)

        fps_idx = farthest_point_sample(xyz, P)
        new_xyz = jnp.take_along_axis(xyz, fps_idx[..., None], axis=1)   # [B,P,3]
        pts_full = xyz if feats is None else jnp.concatenate([xyz, feats], axis=-1)

        scale_feats = []
        for s_i, scale in enumerate(params["stages"][i]):
            S = SA_N_SAMPLES[i][s_i]
            radius = SA_RADII[i][s_i]
            cin_pad = scale["cin_pad"]
            c_last = scale["chans"][-1]

            idx = ball_query(radius, S, xyz, new_xyz)                    # [B,P,S]
            idx_g = idx + (jnp.arange(B, dtype=jnp.int32) * N)[:, None, None]
            pts = jnp.pad(pts_full,
                          ((0, 0), (0, 0), (0, cin_pad - pts_full.shape[-1])))
            pts = pts.reshape(B * N, cin_pad)                            # point table
            ctr = jnp.pad(new_xyz, ((0, 0), (0, 0), (0, cin_pad - 3)))   # [B,P,cin_pad]

            if last:
                # rows (s, p, b)-major -> pooled (p, b)-major for the fused single-dot FC
                idx_rows = jnp.transpose(idx_g, (2, 1, 0)).reshape(S * P * B, 1)
                ctr_rows = jnp.tile(
                    jnp.transpose(ctr, (1, 0, 2)).reshape(P * B, cin_pad), (S, 1))
                run = _make_sa_kernel(
                    S=S, n_group=P * B, n_src=B * N, c_last=c_last,
                    layer_offs=scale["layer_offs"],
                    fc=(B, P, scale["out_c"], scale["wfc_off"], scale["bfc_off"]))
                return run(idx_rows, pts, ctr_rows, scale["packed"])     # [B, out_c]

            # rows (s, b, p)-major -> pooled (b, p)-major feeds the next stage directly
            idx_rows = jnp.transpose(idx_g, (2, 0, 1)).reshape(S * B * P, 1)
            ctr_rows = jnp.tile(ctr.reshape(B * P, cin_pad), (S, 1))
            run = _make_sa_kernel(S=S, n_group=B * P, n_src=B * N, c_last=c_last,
                                  layer_offs=scale["layer_offs"])
            pooled = run(idx_rows, pts, ctr_rows, scale["packed"])       # [B*P, c_last]
            scale_feats.append(pooled.reshape(B, P, c_last))

        feats = (scale_feats[0] if len(scale_feats) == 1
                 else jnp.concatenate(scale_feats, axis=-1))             # [B, P, C']
        xyz = new_xyz


# ----------------------------------------------------------------------------
if __name__ == "__main__":
    key = jax.random.PRNGKey(0)
    key, pkey, xkey = jax.random.split(key, 3)
    params = init_params(pkey)

    B, N, C_extra = 2, 16, 4          # input pointcloud: [B, N, 3 + C]
    pc = jax.random.normal(xkey, (B, N, 3 + C_extra), jnp.float32)

    fwd = jax.jit(functools.partial(pointnet_pp_forward, params=params))
    out = fwd(pc)
    jax.block_until_ready(out)
    assert out.shape == (B, SA_MLPS[-1][-1][-1]), out.shape
    assert bool(jnp.all(jnp.isfinite(out)))
    print("KERNEL_OK")
</pallas_src>

<mosaic_0001>
module attributes {stable_mosaic.version = 11 : i64} {
  func.func @kernel(%arg0: memref<128x1xi32, #tpu.memory_space<vmem>>, %arg1: memref<32x8xf32, #tpu.memory_space<vmem>>, %arg2: memref<128x8xf32, #tpu.memory_space<vmem>>, %arg3: memref<40x32xf32, #tpu.memory_space<vmem>>, %arg4: memref<16x32xf32, #tpu.memory_space<vmem>>) attributes {dimension_semantics = [], scalar_prefetch = 0 : i64, scratch_operands = 0 : i64, tpu.core_type = #tpu.core_type<tc>} {
    %0 = tpu.iota {dimensions = array<i32: 1>} : vector<128x32xi32>
    %c0 = arith.constant 0 : index
    %c0_0 = arith.constant 0 : index
    %1 = vector.load %arg0[%c0, %c0_0] : memref<128x1xi32, #tpu.memory_space<vmem>>, vector<128x1xi32>
    %2 = vector.broadcast %1 : vector<128x1xi32> to vector<128x32xi32>
    %3 = arith.cmpi eq, %2, %0 : vector<128x32xi32>
    %cst = arith.constant 1.000000e+00 : f32
    %cst_1 = arith.constant 0.000000e+00 : f32
    %4 = vector.broadcast %cst : f32 to vector<128x32xf32>
    %5 = vector.broadcast %cst_1 : f32 to vector<128x32xf32>
    %6 = arith.select %3, %4, %5 : vector<128x32xi1>, vector<128x32xf32>
    %c0_2 = arith.constant 0 : index
    %c0_3 = arith.constant 0 : index
    %7 = vector.load %arg1[%c0_2, %c0_3] : memref<32x8xf32, #tpu.memory_space<vmem>>, vector<32x8xf32>
    %cst_4 = arith.constant dense<0.000000e+00> : vector<128x8xf32>
    %8 = tpu.matmul %6, %7, %cst_4 {dimension_numbers = #tpu.dot_dimension_numbers<[1], [0], [0], [1], [0, 0, 1, 1], [], []>} : vector<128x32xf32>, vector<32x8xf32>, vector<128x8xf32> -> vector<128x8xf32>
    %c0_5 = arith.constant 0 : index
    %c0_6 = arith.constant 0 : index
    %9 = vector.load %arg2[%c0_5, %c0_6] : memref<128x8xf32, #tpu.memory_space<vmem>>, vector<128x8xf32>
    %10 = arith.subf %8, %9 : vector<128x8xf32>
    %c0_7 = arith.constant 0 : index
    %c0_8 = arith.constant 0 : index
    %11 = vector.load %arg3[%c0_7, %c0_8] : memref<40x32xf32, #tpu.memory_space<vmem>>, vector<8x16xf32>
    %c8 = arith.constant 8 : index
    %c0_9 = arith.constant 0 : index
    %12 = vector.load %arg3[%c8, %c0_9] : memref<40x32xf32, #tpu.memory_space<vmem>>, vector<1x16xf32>
    %cst_10 = arith.constant dense<0.000000e+00> : vector<128x16xf32>
    %13 = tpu.matmul %10, %11, %cst_10 {dimension_numbers = #tpu.dot_dimension_numbers<[1], [0], [0], [1], [0, 0, 1, 1], [], []>} : vector<128x8xf32>, vector<8x16xf32>, vector<128x16xf32> -> vector<128x16xf32>
    %14 = vector.broadcast %12 : vector<1x16xf32> to vector<128x16xf32>
    %15 = arith.addf %13, %14 : vector<128x16xf32>
    %cst_11 = arith.constant 0.000000e+00 : f32
    %16 = vector.broadcast %cst_11 : f32 to vector<128x16xf32>
    %17 = arith.maximumf %15, %16 : vector<128x16xf32>
    %c16 = arith.constant 16 : index
    %c0_12 = arith.constant 0 : index
    %18 = vector.load %arg3[%c16, %c0_12] : memref<40x32xf32, #tpu.memory_space<vmem>>, vector<16x32xf32>
    %c32 = arith.constant 32 : index
    %c0_13 = arith.constant 0 : index
    %19 = vector.load %arg3[%c32, %c0_13] : memref<40x32xf32, #tpu.memory_space<vmem>>, vector<1x32xf32>
    %cst_14 = arith.constant dense<0.000000e+00> : vector<128x32xf32>
    %20 = tpu.matmul %17, %18, %cst_14 {dimension_numbers = #tpu.dot_dimension_numbers<[1], [0], [0], [1], [0, 0, 1, 1], [], []>} : vector<128x16xf32>, vector<16x32xf32>, vector<128x32xf32> -> vector<128x32xf32>
    %21 = vector.broadcast %19 : vector<1x32xf32> to vector<128x32xf32>
    %22 = arith.addf %20, %21 : vector<128x32xf32>
    %cst_15 = arith.constant 0.000000e+00 : f32
    %23 = vector.broadcast %cst_15 : f32 to vector<128x32xf32>
    %24 = arith.maximumf %22, %23 : vector<128x32xf32>
    %25 = vector.extract_strided_slice %24 {offsets = [0, 0], sizes = [16, 32], strides = [1, 1]} : vector<128x32xf32> to vector<16x32xf32>
    %26 = vector.extract_strided_slice %24 {offsets = [16, 0], sizes = [16, 32], strides = [1, 1]} : vector<128x32xf32> to vector<16x32xf32>
    %27 = arith.maximumf %25, %26 : vector<16x32xf32>
    %28 = vector.extract_strided_slice %24 {offsets = [32, 0], sizes = [16, 32], strides = [1, 1]} : vector<128x32xf32> to vector<16x32xf32>
    %29 = arith.maximumf %27, %28 : vector<16x32xf32>
    %30 = vector.extract_strided_slice %24 {offsets = [48, 0], sizes = [16, 32], strides = [1, 1]} : vector<128x32xf32> to vector<16x32xf32>
    %31 = arith.maximumf %29, %30 : vector<16x32xf32>
    %32 = vector.extract_strided_slice %24 {offsets = [64, 0], sizes = [16, 32], strides = [1, 1]} : vector<128x32xf32> to vector<16x32xf32>
    %33 = arith.maximumf %31, %32 : vector<16x32xf32>
    %34 = vector.extract_strided_slice %24 {offsets = [80, 0], sizes = [16, 32], strides = [1, 1]} : vector<128x32xf32> to vector<16x32xf32>
    %35 = arith.maximumf %33, %34 : vector<16x32xf32>
    %36 = vector.extract_strided_slice %24 {offsets = [96, 0], sizes = [16, 32], strides = [1, 1]} : vector<128x32xf32> to vector<16x32xf32>
    %37 = arith.maximumf %35, %36 : vector<16x32xf32>
    %38 = vector.extract_strided_slice %24 {offsets = [112, 0], sizes = [16, 32], strides = [1, 1]} : vector<128x32xf32> to vector<16x32xf32>
    %39 = arith.maximumf %37, %38 : vector<16x32xf32>
    %c0_16 = arith.constant 0 : index
    %c0_17 = arith.constant 0 : index
    %40 = vector.load %arg4[%c0_16, %c0_17] : memref<16x32xf32, #tpu.memory_space<vmem>>, vector<16x32xf32>
    tpu.vector_store %arg4[%c0_16, %c0_17], %39 {strides = array<i32>} : memref<16x32xf32, #tpu.memory_space<vmem>>, vector<16x32xf32>,
    return
  }
}

module attributes {stable_mosaic.version = 11 : i64} {
  func.func @kernel_fc(%arg0: memref<64x1xi32, #tpu.memory_space<vmem>>, %arg1: memref<16x40xf32, #tpu.memory_space<vmem>>, %arg2: memref<64x40xf32, #tpu.memory_space<vmem>>, %arg3: memref<352x64xf32, #tpu.memory_space<vmem>>, %arg4: memref<2x64xf32, #tpu.memory_space<vmem>>, %arg5: memref<2x256xf32, #tpu.memory_space<vmem>>) attributes {dimension_semantics = [], scalar_prefetch = 0 : i64, scratch_operands = 1 : i64, tpu.core_type = #tpu.core_type<tc>} {
    %0 = tpu.iota {dimensions = array<i32: 1>} : vector<64x16xi32>
    %c0 = arith.constant 0 : index
    %c0_0 = arith.constant 0 : index
    %1 = vector.load %arg0[%c0, %c0_0] : memref<64x1xi32, #tpu.memory_space<vmem>>, vector<64x1xi32>
    %2 = vector.broadcast %1 : vector<64x1xi32> to vector<64x16xi32>
    %3 = arith.cmpi eq, %2, %0 : vector<64x16xi32>
    %cst = arith.constant 1.000000e+00 : f32
    %cst_1 = arith.constant 0.000000e+00 : f32
    %4 = vector.broadcast %cst : f32 to vector<64x16xf32>
    %5 = vector.broadcast %cst_1 : f32 to vector<64x16xf32>
    %6 = arith.select %3, %4, %5 : vector<64x16xi1>, vector<64x16xf32>
    %c0_2 = arith.constant 0 : index
    %c0_3 = arith.constant 0 : index
    %7 = vector.load %arg1[%c0_2, %c0_3] : memref<16x40xf32, #tpu.memory_space<vmem>>, vector<16x40xf32>
    %cst_4 = arith.constant dense<0.000000e+00> : vector<64x40xf32>
    %8 = tpu.matmul %6, %7, %cst_4 {dimension_numbers = #tpu.dot_dimension_numbers<[1], [0], [0], [1], [0, 0, 1, 1], [], []>} : vector<64x16xf32>, vector<16x40xf32>, vector<64x40xf32> -> vector<64x40xf32>
    %c0_5 = arith.constant 0 : index
    %c0_6 = arith.constant 0 : index
    %9 = vector.load %arg2[%c0_5, %c0_6] : memref<64x40xf32, #tpu.memory_space<vmem>>, vector<64x40xf32>
    %10 = arith.subf %8, %9 : vector<64x40xf32>
    %c0_7 = arith.constant 0 : index
    %c0_8 = arith.constant 0 : index
    %11 = vector.load %arg3[%c0_7, %c0_8] : memref<352x64xf32, #tpu.memory_space<vmem>>, vector<40x32xf32>
    %c40 = arith.constant 40 : index
    %c0_9 = arith.constant 0 : index
    %12 = vector.load %arg3[%c40, %c0_9] : memref<352x64xf32, #tpu.memory_space<vmem>>, vector<1x32xf32>
    %cst_10 = arith.constant dense<0.000000e+00> : vector<64x32xf32>
    %13 = tpu.matmul %10, %11, %cst_10 {dimension_numbers = #tpu.dot_dimension_numbers<[1], [0], [0], [1], [0, 0, 1, 1], [], []>} : vector<64x40xf32>, vector<40x32xf32>, vector<64x32xf32> -> vector<64x32xf32>
    %14 = vector.broadcast %12 : vector<1x32xf32> to vector<64x32xf32>
    %15 = arith.addf %13, %14 : vector<64x32xf32>
    %cst_11 = arith.constant 0.000000e+00 : f32
    %16 = vector.broadcast %cst_11 : f32 to vector<64x32xf32>
    %17 = arith.maximumf %15, %16 : vector<64x32xf32>
    %c48 = arith.constant 48 : index
    %c0_12 = arith.constant 0 : index
    %18 = vector.load %arg3[%c48, %c0_12] : memref<352x64xf32, #tpu.memory_space<vmem>>, vector<32x64xf32>
    %c80 = arith.constant 80 : index
    %c0_13 = arith.constant 0 : index
    %19 = vector.load %arg3[%c80, %c0_13] : memref<352x64xf32, #tpu.memory_space<vmem>>, vector<1x64xf32>
    %cst_14 = arith.constant dense<0.000000e+00> : vector<64x64xf32>
    %20 = tpu.matmul %17, %18, %cst_14 {dimension_numbers = #tpu.dot_dimension_numbers<[1], [0], [0], [1], [0, 0, 1, 1], [], []>} : vector<64x32xf32>, vector<32x64xf32>, vector<64x64xf32> -> vector<64x64xf32>
    %21 = vector.broadcast %19 : vector<1x64xf32> to vector<64x64xf32>
    %22 = arith.addf %20, %21 : vector<64x64xf32>
    %cst_15 = arith.constant 0.000000e+00 : f32
    %23 = vector.broadcast %cst_15 : f32 to vector<64x64xf32>
    %24 = arith.maximumf %22, %23 : vector<64x64xf32>
    %25 = vector.extract_strided_slice %24 {offsets = [0, 0], sizes = [8, 64], strides = [1, 1]} : vector<64x64xf32> to vector<8x64xf32>
    %26 = vector.extract_strided_slice %24 {offsets = [8, 0], sizes = [8, 64], strides = [1, 1]} : vector<64x64xf32> to vector<8x64xf32>
    %27 = arith.maximumf %25, %26 : vector<8x64xf32>
    %28 = vector.extract_strided_slice %24 {offsets = [16, 0], sizes = [8, 64], strides = [1, 1]} : vector<64x64xf32> to vector<8x64xf32>
    %29 = arith.maximumf %27, %28 : vector<8x64xf32>
    %30 = vector.extract_strided_slice %24 {offsets = [24, 0], sizes = [8, 64], strides = [1, 1]} : vector<64x64xf32> to vector<8x64xf32>
    %31 = arith.maximumf %29, %30 : vector<8x64xf32>
    %32 = vector.extract_strided_slice %24 {offsets = [32, 0], sizes = [8, 64], strides = [1, 1]} : vector<64x64xf32> to vector<8x64xf32>
    %33 = arith.maximumf %31, %32 : vector<8x64xf32>
    %34 = vector.extract_strided_slice %24 {offsets = [40, 0], sizes = [8, 64], strides = [1, 1]} : vector<64x64xf32> to vector<8x64xf32>
    %35 = arith.maximumf %33, %34 : vector<8x64xf32>
    %36 = vector.extract_strided_slice %24 {offsets = [48, 0], sizes = [8, 64], strides = [1, 1]} : vector<64x64xf32> to vector<8x64xf32>
    %37 = arith.maximumf %35, %36 : vector<8x64xf32>
    %38 = vector.extract_strided_slice %24 {offsets = [56, 0], sizes = [8, 64], strides = [1, 1]} : vector<64x64xf32> to vector<8x64xf32>
    %39 = arith.maximumf %37, %38 : vector<8x64xf32>
    %40 = vector.extract_strided_slice %39 {offsets = [0, 0], sizes = [2, 64], strides = [1, 1]} : vector<8x64xf32> to vector<2x64xf32>
    %c0_16 = arith.constant 0 : index
    %c0_17 = arith.constant 0 : index
    %41 = vector.load %arg5[%c0_16, %c0_17] : memref<2x256xf32, #tpu.memory_space<vmem>>, vector<2x64xf32>
    tpu.vector_store %arg5[%c0_16, %c0_17], %40 {strides = array<i32>} : memref<2x256xf32, #tpu.memory_space<vmem>>, vector<2x64xf32>,
    %42 = vector.extract_strided_slice %39 {offsets = [2, 0], sizes = [2, 64], strides = [1, 1]} : vector<8x64xf32> to vector<2x64xf32>
    %c0_18 = arith.constant 0 : index
    %c64 = arith.constant 64 : index
    %43 = vector.load %arg5[%c0_18, %c64] : memref<2x256xf32, #tpu.memory_space<vmem>>, vector<2x64xf32>
    tpu.vector_store %arg5[%c0_18, %c64], %42 {strides = array<i32>} : memref<2x256xf32, #tpu.memory_space<vmem>>, vector<2x64xf32>,
    %44 = vector.extract_strided_slice %39 {offsets = [4, 0], sizes = [2, 64], strides = [1, 1]} : vector<8x64xf32> to vector<2x64xf32>
    %c0_19 = arith.constant 0 : index
    %c128 = arith.constant 128 : index
    %45 = vector.load %arg5[%c0_19, %c128] : memref<2x256xf32, #tpu.memory_space<vmem>>, vector<2x64xf32>
    tpu.vector_store %arg5[%c0_19, %c128], %44 {strides = array<i32>} : memref<2x256xf32, #tpu.memory_space<vmem>>, vector<2x64xf32>,
    %46 = vector.extract_strided_slice %39 {offsets = [6, 0], sizes = [2, 64], strides = [1, 1]} : vector<8x64xf32> to vector<2x64xf32>
    %c0_20 = arith.constant 0 : index
    %c192 = arith.constant 192 : index
    %47 = vector.load %arg5[%c0_20, %c192] : memref<2x256xf32, #tpu.memory_space<vmem>>, vector<2x64xf32>
    tpu.vector_store %arg5[%c0_20, %c192], %46 {strides = array<i32>} : memref<2x256xf32, #tpu.memory_space<vmem>>, vector<2x64xf32>,
    %c88 = arith.constant 88 : index
    %c0_21 = arith.constant 0 : index
    %48 = vector.load %arg3[%c88, %c0_21] : memref<352x64xf32, #tpu.memory_space<vmem>>, vector<256x64xf32>
    %c344 = arith.constant 344 : index
    %c0_22 = arith.constant 0 : index
    %49 = vector.load %arg3[%c344, %c0_22] : memref<352x64xf32, #tpu.memory_space<vmem>>, vector<1x64xf32>
    %c0_23 = arith.constant 0 : index
    %c0_24 = arith.constant 0 : index
    %50 = vector.load %arg5[%c0_23, %c0_24] : memref<2x256xf32, #tpu.memory_space<vmem>>, vector<2x256xf32>
    %cst_25 = arith.constant dense<0.000000e+00> : vector<2x64xf32>
    %51 = tpu.matmul %50, %48, %cst_25 {dimension_numbers = #tpu.dot_dimension_numbers<[1], [0], [0], [1], [0, 0, 1, 1], [], []>} : vector<2x256xf32>, vector<256x64xf32>, vector<2x64xf32> -> vector<2x64xf32>
    %52 = vector.broadcast %49 : vector<1x64xf32> to vector<2x64xf32>
    %53 = arith.addf %52, %51 : vector<2x64xf32>
    %c0_26 = arith.constant 0 : index
    %c0_27 = arith.constant 0 : index
    %54 = vector.load %arg4[%c0_26, %c0_27] : memref<2x64xf32, #tpu.memory_space<vmem>>, vector<2x64xf32>
    tpu.vector_store %arg4[%c0_26, %c0_27], %53 {strides = array<i32>} : memref<2x64xf32, #tpu.memory_space<vmem>>, vector<2x64xf32>,
    return
  }
}

</mosaic_0001>

<llo_original>
// kernel: custom-call.8
$region0: #{custom-call.8}
  %s0 = inlined_call_operand.vmem [shape: f32[2,16], index: 0, kind: output, shape index: {}]

// kernel: custom-call.9
$region0: #{custom-call.9}
  %s0 = inlined_call_operand.vmem [shape: f32[2,8], index: 0, kind: output, shape index: {}]

// kernel: pointnet_pp_forward.2
$region0: #{pointnet_pp_forward.2}
  #allocation0 [shape = 'u32[]', space=smem, size = 0x4, offset = 0x4, fixed_abs, tag = 'smem constant byte address 0x4 - core index']
  #allocation1 [shape = 'u32[144,128]{1,0:T(1,128)}', space=vmem, size = 0x12000, scoped, tag = 'internal scratch']
  %s0 = inlined_call_operand.vmem [shape: s32[128,1], index: 0, kind: input, shape index: {}]
  %s1 = inlined_call_operand.vmem [shape: f32[32,8], index: 1, kind: input, shape index: {}]
  %s2 = inlined_call_operand.vmem [shape: f32[128,8], index: 2, kind: input, shape index: {}]
  %s3 = inlined_call_operand.vmem [shape: f32[40,32], index: 3, kind: input, shape index: {}]
  %s4 = inlined_call_operand.vmem [shape: f32[16,32], index: 4, kind: output, shape index: {}]
  %s5 = sld [smem:[#allocation0]]
  $region26: #{pointnet_pp_forward.2} parent=0
    _
  %s7 = ssub.s32 1, %s5
  %s8 = scalar_select 0, %s7, %s5
  // Predicated region
  $region2: #{pointnet_pp_forward.2} parent=0 // pred_check
    _
  $region3: #{pointnet_pp_forward.2} parent=0 // pred_check_branch
    %10 = sbr.rel (0) target = $region5
  $region4: #{pointnet_pp_forward.2} parent=0 // pred_region
    _
  $region5: #{pointnet_pp_forward.2} parent=0 // pred_fallthru
    _
  // Predicated region
  $region6: #{pointnet_pp_forward.2} parent=0 // pred_check
    _
  $region7: #{pointnet_pp_forward.2} parent=0 // pred_check_branch
    %12 = sbr.rel (0) target = $region9
  $region8: #{pointnet_pp_forward.2} parent=0 // pred_region
    _
  $region9: #{pointnet_pp_forward.2} parent=0 // pred_fallthru
    _
  // Predicated region
  $region10: #{pointnet_pp_forward.2} parent=0 // pred_check
    _
  $region11: #{pointnet_pp_forward.2} parent=0 // pred_check_branch
    %14 = sbr.rel (0) target = $region13
  $region12: #{pointnet_pp_forward.2} parent=0 // pred_region
    _
  $region13: #{pointnet_pp_forward.2} parent=0 // pred_fallthru
    _
  // Predicated region
  $region14: #{pointnet_pp_forward.2} parent=0 // pred_check
    _
  $region15: #{pointnet_pp_forward.2} parent=0 // pred_check_branch
    %16 = sbr.rel (0) target = $region17
  $region16: #{pointnet_pp_forward.2} parent=0 // pred_region
    _
  $region17: #{pointnet_pp_forward.2} parent=0 // pred_fallthru
    _
  %v17 = vlaneseq
  %v18 = vand.u32 %v17, 127
  %v19 = vld [vmem:[%s0] sm:$0xff]
  %v20 = vld [vmem:[%s0 + $0x8] sm:$0xff]
  %v21 = vld [vmem:[%s0 + $0x10] sm:$0xff]
  %v22 = vld [vmem:[%s0 + $0x18] sm:$0xff]
  %v23 = vld [vmem:[%s0 + $0x20] sm:$0xff]
  %v24 = vld [vmem:[%s0 + $0x28] sm:$0xff]
  %v25 = vld [vmem:[%s0 + $0x30] sm:$0xff]
  %v26 = vld [vmem:[%s0 + $0x38] sm:$0xff]
  %v27 = vld [vmem:[%s0 + $0x40] sm:$0xff]
  %v28 = vld [vmem:[%s0 + $0x48] sm:$0xff]
  %v29 = vld [vmem:[%s0 + $0x50] sm:$0xff]
  %v30 = vld [vmem:[%s0 + $0x58] sm:$0xff]
  %v31 = vld [vmem:[%s0 + $0x60] sm:$0xff]
  %v32 = vld [vmem:[%s0 + $0x68] sm:$0xff]
  %v33 = vld [vmem:[%s0 + $0x70] sm:$0xff]
  %v34 = vld [vmem:[%s0 + $0x78] sm:$0xff]
  %35 = vset.pattern.permute.xlu0 0
  %36 = vperm.xlu0 %35, %v19
  %v37 = vpop.permute.xlu0 %36
  %38 = vset.pattern.permute.xlu0 0
  %39 = vperm.xlu0 %38, %v20
  %v40 = vpop.permute.xlu0 %39
  %41 = vset.pattern.permute.xlu0 0
  %42 = vperm.xlu0 %41, %v21
  %v43 = vpop.permute.xlu0 %42
  %44 = vset.pattern.permute.xlu0 0
  %45 = vperm.xlu0 %44, %v22
  %v46 = vpop.permute.xlu0 %45
  %47 = vset.pattern.permute.xlu0 0
  %48 = vperm.xlu0 %47, %v23
  %v49 = vpop.permute.xlu0 %48
  %50 = vset.pattern.permute.xlu0 0
  %51 = vperm.xlu0 %50, %v24
  %v52 = vpop.permute.xlu0 %51
  %53 = vset.pattern.permute.xlu0 0
  %54 = vperm.xlu0 %53, %v25
  %v55 = vpop.permute.xlu0 %54
  %56 = vset.pattern.permute.xlu0 0
  %57 = vperm.xlu0 %56, %v26
  %v58 = vpop.permute.xlu0 %57
  %59 = vset.pattern.permute.xlu0 0
  %60 = vperm.xlu0 %59, %v27
  %v61 = vpop.permute.xlu0 %60
  %62 = vset.pattern.permute.xlu0 0
  %63 = vperm.xlu0 %62, %v28
  %v64 = vpop.permute.xlu0 %63
  %65 = vset.pattern.permute.xlu0 0
  %66 = vperm.xlu0 %65, %v29
  %v67 = vpop.permute.xlu0 %66
  %68 = vset.pattern.permute.xlu0 0
  %69 = vperm.xlu0 %68, %v30
  %v70 = vpop.permute.xlu0 %69
  %71 = vset.pattern.permute.xlu0 0
  %72 = vperm.xlu0 %71, %v31
  %v73 = vpop.permute.xlu0 %72
  %74 = vset.pattern.permute.xlu0 0
  %75 = vperm.xlu0 %74, %v32
  %v76 = vpop.permute.xlu0 %75
  %77 = vset.pattern.permute.xlu0 0
  %78 = vperm.xlu0 %77, %v33
  %v79 = vpop.permute.xlu0 %78
  %80 = vset.pattern.permute.xlu0 0
  %81 = vperm.xlu0 %80, %v34
  %v82 = vpop.permute.xlu0 %81
  %vm83 = vcmp.eq.s32.totalorder %v37, %v18
  %vm84 = vcmp.eq.s32.totalorder %v40, %v18
  %vm85 = vcmp.eq.s32.totalorder %v43, %v18
  %vm86 = vcmp.eq.s32.totalorder %v46, %v18
  %vm87 = vcmp.eq.s32.totalorder %v49, %v18
  %vm88 = vcmp.eq.s32.totalorder %v52, %v18
  %vm89 = vcmp.eq.s32.totalorder %v55, %v18
  %vm90 = vcmp.eq.s32.totalorder %v58, %v18
  %vm91 = vcmp.eq.s32.totalorder %v61, %v18
  %vm92 = vcmp.eq.s32.totalorder %v64, %v18
  %vm93 = vcmp.eq.s32.totalorder %v67, %v18
  %vm94 = vcmp.eq.s32.totalorder %v70, %v18
  %vm95 = vcmp.eq.s32.totalorder %v73, %v18
  %vm96 = vcmp.eq.s32.totalorder %v76, %v18
  %vm97 = vcmp.eq.s32.totalorder %v79, %v18
  %vm98 = vcmp.eq.s32.totalorder %v82, %v18
  %v99 = vsel %vm83, 1.0, 0.0
  %v100 = vsel %vm84, 1.0, 0.0
  %v101 = vsel %vm85, 1.0, 0.0
  %v102 = vsel %vm86, 1.0, 0.0
  %v103 = vsel %vm87, 1.0, 0.0
  %v104 = vsel %vm88, 1.0, 0.0
  %v105 = vsel %vm89, 1.0, 0.0
  %v106 = vsel %vm90, 1.0, 0.0
  %v107 = vsel %vm91, 1.0, 0.0
  %v108 = vsel %vm92, 1.0, 0.0
  %v109 = vsel %vm93, 1.0, 0.0
  %v110 = vsel %vm94, 1.0, 0.0
  %v111 = vsel %vm95, 1.0, 0.0
  %v112 = vsel %vm96, 1.0, 0.0
  %v113 = vsel %vm97, 1.0, 0.0
  %v114 = vsel %vm98, 1.0, 0.0
  %v115 = vld [vmem:[%s1] sm:$0xff]
  %v116 = vld [vmem:[%s1 + $0x8] sm:$0xff]
  %v117 = vld [vmem:[%s1 + $0x10] sm:$0xff]
  %v118 = vld [vmem:[%s1 + $0x18] sm:$0xff]
  %vm119 = vcmask 261120
  %v121 = vsel %vm119, %v99, 0
  %v124 = vsel %vm119, %v100, 0
  %v127 = vsel %vm119, %v101, 0
  %v130 = vsel %vm119, %v102, 0
  %v133 = vsel %vm119, %v103, 0
  %v136 = vsel %vm119, %v104, 0
  %v139 = vsel %vm119, %v105, 0
  %v142 = vsel %vm119, %v106, 0
  %v145 = vsel %vm119, %v107, 0
  %v148 = vsel %vm119, %v108, 0
  %v151 = vsel %vm119, %v109, 0
  %v154 = vsel %vm119, %v110, 0
  %v157 = vsel %vm119, %v111, 0
  %v160 = vsel %vm119, %v112, 0
  %v163 = vsel %vm119, %v113, 0
  %v166 = vsel %vm119, %v114, 0
  %168 = vmatprep.subr.mxu0 0.0
  %169 = vmatpush1.msra.mxu0 0.0
  %170 = vmatprep.subr.mxu0 0.0
  %171 = vmatpush1.msra.mxu0 0.0
  %172 = vmatprep.subr.mxu0 0.0
  %173 = vmatpush1.msra.mxu0 0.0
  %174 = vmatprep.subr.mxu0 0.0
  %175 = vmatpush1.msra.mxu0 0.0
  %176 = vmatprep.subr.mxu0 0.0
  %177 = vmatpush1.msra.mxu0 0.0
  %178 = vmatprep.subr.mxu0 0.0
  %179 = vmatpush1.msra.mxu0 0.0
  %180 = vmatprep.subr.mxu0 0.0
  %181 = vmatpush1.msra.mxu0 0.0
  %182 = vmatprep.subr.mxu0 0.0
  %183 = vmatpush1.msra.mxu0 0.0
  %184 = vmatprep.subr.mxu0 0.0
  %185 = vmatpush1.msra.mxu0 0.0
  %186 = vmatprep.subr.mxu0 0.0
  %187 = vmatpush1.msra.mxu0 0.0
  %188 = vmatprep.subr.mxu0 0.0
  %189 = vmatpush1.msra.mxu0 0.0
  %190 = vmatprep.subr.mxu0 0.0
  %191 = vmatpush1.msra.mxu0 0.0
  %192 = vmatprep.subr.mxu0 0.0
  %193 = vmatpush1.msra.mxu0 %v118
  %194 = vmatprep.subr.mxu0 0.0
  %195 = vmatpush1.msra.mxu0 %v117
  %196 = vmatprep.subr.mxu0 0.0
  %197 = vmatpush1.msra.mxu0 %v116
  %198 = vmatprep.subr.mxu0 0.0
  %199 = vmatpush1.msra.mxu0 %v115
  %200 = vmatprep.subr.mxu0 0.0
  %201 = vmatpush2.msra.mxu0 0.0
  %202 = vmatprep.subr.mxu0 0.0
  %203 = vmatpush2.msra.mxu0 0.0
  %204 = vmatprep.subr.mxu0 0.0
  %205 = vmatpush2.msra.mxu0 0.0
  %206 = vmatprep.subr.mxu0 0.0
  %207 = vmatpush2.msra.mxu0 0.0
  %208 = vmatprep.subr.mxu0 0.0
  %209 = vmatpush2.msra.mxu0 0.0
  %210 = vmatprep.subr.mxu0 0.0
  %211 = vmatpush2.msra.mxu0 0.0
  %212 = vmatprep.subr.mxu0 0.0
  %213 = vmatpush2.msra.mxu0 0.0
  %214 = vmatprep.subr.mxu0 0.0
  %215 = vmatpush2.msra.mxu0 0.0
  %216 = vmatprep.subr.mxu0 0.0
  %217 = vmatpush2.msra.mxu0 0.0
  %218 = vmatprep.subr.mxu0 0.0
  %219 = vmatpush2.msra.mxu0 0.0
  %220 = vmatprep.subr.mxu0 0.0
  %221 = vmatpush2.msra.mxu0 0.0
  %222 = vmatprep.subr.mxu0 0.0
  %223 = vmatpush2.msra.mxu0 0.0
  %224 = vmatprep.subr.mxu0 0.0
  %225 = vmatpush2.msra.mxu0 0.0
  %226 = vmatprep.subr.mxu0 0.0
  %227 = vmatpush2.msra.mxu0 0.0
  %228 = vmatprep.subr.mxu0 0.0
  %229 = vmatpush2.msra.mxu0 0.0
  %230 = vmatprep.subr.mxu0 0.0
  %231 = vmatpush2.msra.mxu0 0.0
  %232 = vmatprep.mubr.f32.mxu0 0.0
  %233 = vmatmul.mubr.f32.gmra.mxu0 %v121
  %v234 = vpop.f32.mrf.mxu0
  %v235 = vadd.f32 0.0, %v234
  %v236 = vpop.f32.mrf.mxu0
  %237 = vmatprep.mubr.f32.mxu0 0.0
  %238 = vmatmul.mubr.f32.gmra.mxu0 %v124
  %v239 = vpop.f32.mrf.mxu0
  %v240 = vadd.f32 0.0, %v239
  %v241 = vpop.f32.mrf.mxu0
  %242 = vmatprep.mubr.f32.mxu0 0.0
  %243 = vmatmul.mubr.f32.gmra.mxu0 %v127
  %v244 = vpop.f32.mrf.mxu0
  %v245 = vadd.f32 0.0, %v244
  %v246 = vpop.f32.mrf.mxu0
  %247 = vmatprep.mubr.f32.mxu0 0.0
  %248 = vmatmul.mubr.f32.gmra.mxu0 %v130
  %v249 = vpop.f32.mrf.mxu0
  %v250 = vadd.f32 0.0, %v249
  %v251 = vpop.f32.mrf.mxu0
  %252 = vmatprep.mubr.f32.mxu0 0.0
  %253 = vmatmul.mubr.f32.gmra.mxu0 %v133
  %v254 = vpop.f32.mrf.mxu0
  %v255 = vadd.f32 0.0, %v254
  %v256 = vpop.f32.mrf.mxu0
  %257 = vmatprep.mubr.f32.mxu0 0.0
  %258 = vmatmul.mubr.f32.gmra.mxu0 %v136
  %v259 = vpop.f32.mrf.mxu0
  %v260 = vadd.f32 0.0, %v259
  %v261 = vpop.f32.mrf.mxu0
  %262 = vmatprep.mubr.f32.mxu0 0.0
  %263 = vmatmul.mubr.f32.gmra.mxu0 %v139
  %v264 = vpop.f32.mrf.mxu0
  %v265 = vadd.f32 0.0, %v264
  %v266 = vpop.f32.mrf.mxu0
  %267 = vmatprep.mubr.f32.mxu0 0.0
  %268 = vmatmul.mubr.f32.gmra.mxu0 %v142
  %v269 = vpop.f32.mrf.mxu0
  %v270 = vadd.f32 0.0, %v269
  %v271 = vpop.f32.mrf.mxu0
  %272 = vmatprep.mubr.f32.mxu0 0.0
  %273 = vmatmul.mubr.f32.gmra.mxu0 %v145
  %v274 = vpop.f32.mrf.mxu0
  %v275 = vadd.f32 0.0, %v274
  %v276 = vpop.f32.mrf.mxu0
  %277 = vmatprep.mubr.f32.mxu0 0.0
  %278 = vmatmul.mubr.f32.gmra.mxu0 %v148
  %v279 = vpop.f32.mrf.mxu0
  %v280 = vadd.f32 0.0, %v279
  %v281 = vpop.f32.mrf.mxu0
  %282 = vmatprep.mubr.f32.mxu0 0.0
  %283 = vmatmul.mubr.f32.gmra.mxu0 %v151
  %v284 = vpop.f32.mrf.mxu0
  %v285 = vadd.f32 0.0, %v284
  %v286 = vpop.f32.mrf.mxu0
  %287 = vmatprep.mubr.f32.mxu0 0.0
  %288 = vmatmul.mubr.f32.gmra.mxu0 %v154
  %v289 = vpop.f32.mrf.mxu0
  %v290 = vadd.f32 0.0, %v289
  %v291 = vpop.f32.mrf.mxu0
  %292 = vmatprep.mubr.f32.mxu0 0.0
  %293 = vmatmul.mubr.f32.gmra.mxu0 %v157
  %v294 = vpop.f32.mrf.mxu0
  %v295 = vadd.f32 0.0, %v294
  %v296 = vpop.f32.mrf.mxu0
  %297 = vmatprep.mubr.f32.mxu0 0.0
  %298 = vmatmul.mubr.f32.gmra.mxu0 %v160
  %v299 = vpop.f32.mrf.mxu0
  %v300 = vadd.f32 0.0, %v299
  %v301 = vpop.f32.mrf.mxu0
  %302 = vmatprep.mubr.f32.mxu0 0.0
  %303 = vmatmul.mubr.f32.gmra.mxu0 %v163
  %v304 = vpop.f32.mrf.mxu0
  %v305 = vadd.f32 0.0, %v304
  %v306 = vpop.f32.mrf.mxu0
  %307 = vmatprep.mubr.f32.mxu0 0.0
  %308 = vmatmul.mubr.f32.gmra.mxu0 %v166
  %v309 = vpop.f32.mrf.mxu0
  %v310 = vadd.f32 0.0, %v309
  %v311 = vpop.f32.mrf.mxu0
  %312 = vdwg.mxu0
  %v313 = vld [vmem:[%s2] sm:$0xff]
  %v314 = vld [vmem:[%s2 + $0x8] sm:$0xff]
  %v315 = vld [vmem:[%s2 + $0x10] sm:$0xff]
  %v316 = vld [vmem:[%s2 + $0x18] sm:$0xff]
  %v317 = vld [vmem:[%s2 + $0x20] sm:$0xff]
  %v318 = vld [vmem:[%s2 + $0x28] sm:$0xff]
  %v319 = vld [vmem:[%s2 + $0x30] sm:$0xff]
  %v320 = vld [vmem:[%s2 + $0x38] sm:$0xff]
  %v321 = vld [vmem:[%s2 + $0x40] sm:$0xff]
  %v322 = vld [vmem:[%s2 + $0x48] sm:$0xff]
  %v323 = vld [vmem:[%s2 + $0x50] sm:$0xff]
  %v324 = vld [vmem:[%s2 + $0x58] sm:$0xff]
  %v325 = vld [vmem:[%s2 + $0x60] sm:$0xff]
  %v326 = vld [vmem:[%s2 + $0x68] sm:$0xff]
  %v327 = vld [vmem:[%s2 + $0x70] sm:$0xff]
  %v328 = vld [vmem:[%s2 + $0x78] sm:$0xff]
  %v329 = vsub.f32 %v235, %v313
  %v330 = vsub.f32 %v240, %v314
  %v331 = vsub.f32 %v245, %v315
  %v332 = vsub.f32 %v250, %v316
  %v333 = vsub.f32 %v255, %v317
  %v334 = vsub.f32 %v260, %v318
  %v335 = vsub.f32 %v265, %v319
  %v336 = vsub.f32 %v270, %v320
  %v337 = vsub.f32 %v275, %v321
  %v338 = vsub.f32 %v280, %v322
  %v339 = vsub.f32 %v285, %v323
  %v340 = vsub.f32 %v290, %v324
  %v341 = vsub.f32 %v295, %v325
  %v342 = vsub.f32 %v300, %v326
  %v343 = vsub.f32 %v305, %v327
  %v344 = vsub.f32 %v310, %v328
  %v345 = vld [vmem:[%s3] sm:$0xff]
  %v346 = vld [vmem:[%s3 + $0x8] sm:$0x1]
  %v347 = vlaneseq
  %v348 = vshrl.u32 %v347, 7
  %v349 = vsub.s32 0, %v348
  %v350 = vrot.slane %v346, %v349
  %vm351 = vcmask 64512
  %v353 = vsel %vm351, %v329, 0
  %v356 = vsel %vm351, %v330, 0
  %v359 = vsel %vm351, %v331, 0
  %v362 = vsel %vm351, %v332, 0
  %v365 = vsel %vm351, %v333, 0
  %v368 = vsel %vm351, %v334, 0
  %v371 = vsel %vm351, %v335, 0
  %v374 = vsel %vm351, %v336, 0
  %v377 = vsel %vm351, %v337, 0
  %v380 = vsel %vm351, %v338, 0
  %v383 = vsel %vm351, %v339, 0
  %v386 = vsel %vm351, %v340, 0
  %v389 = vsel %vm351, %v341, 0
  %v392 = vsel %vm351, %v342, 0
  %v395 = vsel %vm351, %v343, 0
  %v398 = vsel %vm351, %v344, 0
  %400 = vmatprep.subr.mxu0 0.0
  %401 = vmatpush1.msra.mxu0 0.0
  %402 = vmatprep.subr.mxu0 0.0
  %403 = vmatpush1.msra.mxu0 0.0
  %404 = vmatprep.subr.mxu0 0.0
  %405 = vmatpush1.msra.mxu0 0.0
  %406 = vmatprep.subr.mxu0 0.0
  %407 = vmatpush1.msra.mxu0 0.0
  %408 = vmatprep.subr.mxu0 0.0
  %409 = vmatpush1.msra.mxu0 0.0
  %410 = vmatprep.subr.mxu0 0.0
  %411 = vmatpush1.msra.mxu0 0.0
  %412 = vmatprep.subr.mxu0 0.0
  %413 = vmatpush1.msra.mxu0 0.0
  %414 = vmatprep.subr.mxu0 0.0
  %415 = vmatpush1.msra.mxu0 0.0
  %416 = vmatprep.subr.mxu0 0.0
  %417 = vmatpush1.msra.mxu0 0.0
  %418 = vmatprep.subr.mxu0 0.0
  %419 = vmatpush1.msra.mxu0 0.0
  %420 = vmatprep.subr.mxu0 0.0
  %421 = vmatpush1.msra.mxu0 0.0
  %422 = vmatprep.subr.mxu0 0.0
  %423 = vmatpush1.msra.mxu0 0.0
  %424 = vmatprep.subr.mxu0 0.0
  %425 = vmatpush1.msra.mxu0 0.0
  %426 = vmatprep.subr.mxu0 0.0
  %427 = vmatpush1.msra.mxu0 0.0
  %428 = vmatprep.subr.mxu0 0.0
  %429 = vmatpush1.msra.mxu0 0.0
  %430 = vmatprep.subr.mxu0 0.0
  %431 = vmatpush1.msra.mxu0 %v345
  %432 = vmatprep.subr.mxu0 0.0
  %433 = vmatpush2.msra.mxu0 0.0
  %434 = vmatprep.subr.mxu0 0.0
  %435 = vmatpush2.msra.mxu0 0.0
  %436 = vmatprep.subr.mxu0 0.0
  %437 = vmatpush2.msra.mxu0 0.0
  %438 = vmatprep.subr.mxu0 0.0
  %439 = vmatpush2.msra.mxu0 0.0
  %440 = vmatprep.subr.mxu0 0.0
  %441 = vmatpush2.msra.mxu0 0.0
  %442 = vmatprep.subr.mxu0 0.0
  %443 = vmatpush2.msra.mxu0 0.0
  %444 = vmatprep.subr.mxu0 0.0
  %445 = vmatpush2.msra.mxu0 0.0
  %446 = vmatprep.subr.mxu0 0.0
  %447 = vmatpush2.msra.mxu0 0.0
  %448 = vmatprep.subr.mxu0 0.0
  %449 = vmatpush2.msra.mxu0 0.0
  %450 = vmatprep.subr.mxu0 0.0
  %451 = vmatpush2.msra.mxu0 0.0
  %452 = vmatprep.subr.mxu0 0.0
  %453 = vmatpush2.msra.mxu0 0.0
  %454 = vmatprep.subr.mxu0 0.0
  %455 = vmatpush2.msra.mxu0 0.0
  %456 = vmatprep.subr.mxu0 0.0
  %457 = vmatpush2.msra.mxu0 0.0
  %458 = vmatprep.subr.mxu0 0.0
  %459 = vmatpush2.msra.mxu0 0.0
  %460 = vmatprep.subr.mxu0 0.0
  %461 = vmatpush2.msra.mxu0 0.0
  %462 = vmatprep.subr.mxu0 0.0
  %463 = vmatpush2.msra.mxu0 0.0
  %464 = vmatprep.mubr.f32.mxu0 0.0
  %465 = vmatmul.mubr.f32.gmra.mxu0 %v353
  %v466 = vpop.f32.mrf.mxu0
  %v467 = vadd.f32 %v350, %v466
  %v468 = vpop.f32.mrf.mxu0
  %469 = vmatprep.mubr.f32.mxu0 0.0
  %470 = vmatmul.mubr.f32.gmra.mxu0 %v356
  %v471 = vpop.f32.mrf.mxu0
  %v472 = vadd.f32 %v350, %v471
  %v473 = vpop.f32.mrf.mxu0
  %474 = vmatprep.mubr.f32.mxu0 0.0
  %475 = vmatmul.mubr.f32.gmra.mxu0 %v359
  %v476 = vpop.f32.mrf.mxu0
  %v477 = vadd.f32 %v350, %v476
  %v478 = vpop.f32.mrf.mxu0
  %479 = vmatprep.mubr.f32.mxu0 0.0
  %480 = vmatmul.mubr.f32.gmra.mxu0 %v362
  %v481 = vpop.f32.mrf.mxu0
  %v482 = vadd.f32 %v350, %v481
  %v483 = vpop.f32.mrf.mxu0
  %484 = vmatprep.mubr.f32.mxu0 0.0
  %485 = vmatmul.mubr.f32.gmra.mxu0 %v365
  %v486 = vpop.f32.mrf.mxu0
  %v487 = vadd.f32 %v350, %v486
  %v488 = vpop.f32.mrf.mxu0
  %489 = vmatprep.mubr.f32.mxu0 0.0
  %490 = vmatmul.mubr.f32.gmra.mxu0 %v368
  %v491 = vpop.f32.mrf.mxu0
  %v492 = vadd.f32 %v350, %v491
  %v493 = vpop.f32.mrf.mxu0
  %494 = vmatprep.mubr.f32.mxu0 0.0
  %495 = vmatmul.mubr.f32.gmra.mxu0 %v371
  %v496 = vpop.f32.mrf.mxu0
  %v497 = vadd.f32 %v350, %v496
  %v498 = vpop.f32.mrf.mxu0
  %499 = vmatprep.mubr.f32.mxu0 0.0
  %500 = vmatmul.mubr.f32.gmra.mxu0 %v374
  %v501 = vpop.f32.mrf.mxu0
  %v502 = vadd.f32 %v350, %v501
  %v503 = vpop.f32.mrf.mxu0
  %504 = vmatprep.mubr.f32.mxu0 0.0
  %505 = vmatmul.mubr.f32.gmra.mxu0 %v377
  %v506 = vpop.f32.mrf.mxu0
  %v507 = vadd.f32 %v350, %v506
  %v508 = vpop.f32.mrf.mxu0
  %509 = vmatprep.mubr.f32.mxu0 0.0
  %510 = vmatmul.mubr.f32.gmra.mxu0 %v380
  %v511 = vpop.f32.mrf.mxu0
  %v512 = vadd.f32 %v350, %v511
  %v513 = vpop.f32.mrf.mxu0
  %514 = vmatprep.mubr.f32.mxu0 0.0
  %515 = vmatmul.mubr.f32.gmra.mxu0 %v383
  %v516 = vpop.f32.mrf.mxu0
  %v517 = vadd.f32 %v350, %v516
  %v518 = vpop.f32.mrf.mxu0
  %519 = vmatprep.mubr.f32.mxu0 0.0
  %520 = vmatmul.mubr.f32.gmra.mxu0 %v386
  %v521 = vpop.f32.mrf.mxu0
  %v522 = vadd.f32 %v350, %v521
  %v523 = vpop.f32.mrf.mxu0
  %524 = vmatprep.mubr.f32.mxu0 0.0
  %525 = vmatmul.mubr.f32.gmra.mxu0 %v389
  %v526 = vpop.f32.mrf.mxu0
  %v527 = vadd.f32 %v350, %v526
  %v528 = vpop.f32.mrf.mxu0
  %529 = vmatprep.mubr.f32.mxu0 0.0
  %530 = vmatmul.mubr.f32.gmra.mxu0 %v392
  %v531 = vpop.f32.mrf.mxu0
  %v532 = vadd.f32 %v350, %v531
  %v533 = vpop.f32.mrf.mxu0
  %534 = vmatprep.mubr.f32.mxu0 0.0
  %535 = vmatmul.mubr.f32.gmra.mxu0 %v395
  %v536 = vpop.f32.mrf.mxu0
  %v537 = vadd.f32 %v350, %v536
  %v538 = vpop.f32.mrf.mxu0
  %539 = vmatprep.mubr.f32.mxu0 0.0
  %540 = vmatmul.mubr.f32.gmra.mxu0 %v398
  %v541 = vpop.f32.mrf.mxu0
  %v542 = vadd.f32 %v350, %v541
  %v543 = vpop.f32.mrf.mxu0
  %544 = vdwg.mxu0
  %v545 = vmax.f32 %v467, 0.0
  %v546 = vmax.f32 %v472, 0.0
  %v547 = vmax.f32 %v477, 0.0
  %v548 = vmax.f32 %v482, 0.0
  %v549 = vmax.f32 %v487, 0.0
  %v550 = vmax.f32 %v492, 0.0
  %v551 = vmax.f32 %v497, 0.0
  %v552 = vmax.f32 %v502, 0.0
  %v553 = vmax.f32 %v507, 0.0
  %v554 = vmax.f32 %v512, 0.0
  %v555 = vmax.f32 %v517, 0.0
  %v556 = vmax.f32 %v522, 0.0
  %v557 = vmax.f32 %v527, 0.0
  %v558 = vmax.f32 %v532, 0.0
  %v559 = vmax.f32 %v537, 0.0
  %v560 = vmax.f32 %v542, 0.0
  %v561 = vld [vmem:[%s3 + $0x10] sm:$0xff]
  %v562 = vld [vmem:[%s3 + $0x18] sm:$0xff]
  %v563 = vld [vmem:[%s3 + $0x20] sm:$0x1]
  %v564 = vlaneseq
  %v565 = vshrl.u32 %v564, 7
  %v566 = vsub.s32 0, %v565
  %v567 = vrot.slane %v563, %v566
  %vm568 = vcmask 130048
  %v570 = vsel %vm568, %v545, 0
  %v573 = vsel %vm568, %v546, 0
  %v576 = vsel %vm568, %v547, 0
  %v579 = vsel %vm568, %v548, 0
  %v582 = vsel %vm568, %v549, 0
  %v585 = vsel %vm568, %v550, 0
  %v588 = vsel %vm568, %v551, 0
  %v591 = vsel %vm568, %v552, 0
  %v594 = vsel %vm568, %v553, 0
  %v597 = vsel %vm568, %v554, 0
  %v600 = vsel %vm568, %v555, 0
  %v603 = vsel %vm568, %v556, 0
  %v606 = vsel %vm568, %v557, 0
  %v609 = vsel %vm568, %v558, 0
  %v612 = vsel %vm568, %v559, 0
  %v615 = vsel %vm568, %v560, 0
  %617 = vmatprep.subr.mxu0 0.0
  %618 = vmatpush1.msra.mxu0 0.0
  %619 = vmatprep.subr.mxu0 0.0
  %620 = vmatpush1.msra.mxu0 0.0
  %621 = vmatprep.subr.mxu0 0.0
  %622 = vmatpush1.msra.mxu0 0.0
  %623 = vmatprep.subr.mxu0 0.0
  %624 = vmatpush1.msra.mxu0 0.0
  %625 = vmatprep.subr.mxu0 0.0
  %626 = vmatpush1.msra.mxu0 0.0
  %627 = vmatprep.subr.mxu0 0.0
  %628 = vmatpush1.msra.mxu0 0.0
  %629 = vmatprep.subr.mxu0 0.0
  %630 = vmatpush1.msra.mxu0 0.0
  %631 = vmatprep.subr.mxu0 0.0
  %632 = vmatpush1.msra.mxu0 0.0
  %633 = vmatprep.subr.mxu0 0.0
  %634 = vmatpush1.msra.mxu0 0.0
  %635 = vmatprep.subr.mxu0 0.0
  %636 = vmatpush1.msra.mxu0 0.0
  %637 = vmatprep.subr.mxu0 0.0
  %638 = vmatpush1.msra.mxu0 0.0
  %639 = vmatprep.subr.mxu0 0.0
  %640 = vmatpush1.msra.mxu0 0.0
  %641 = vmatprep.subr.mxu0 0.0
  %642 = vmatpush1.msra.mxu0 0.0
  %643 = vmatprep.subr.mxu0 0.0
  %644 = vmatpush1.msra.mxu0 0.0
  %645 = vmatprep.subr.mxu0 0.0
  %646 = vmatpush1.msra.mxu0 %v562
  %647 = vmatprep.subr.mxu0 0.0
  %648 = vmatpush1.msra.mxu0 %v561
  %649 = vmatprep.subr.mxu0 0.0
  %650 = vmatpush2.msra.mxu0 0.0
  %651 = vmatprep.subr.mxu0 0.0
  %652 = vmatpush2.msra.mxu0 0.0
  %653 = vmatprep.subr.mxu0 0.0
  %654 = vmatpush2.msra.mxu0 0.0
  %655 = vmatprep.subr.mxu0 0.0
  %656 = vmatpush2.msra.mxu0 0.0
  %657 = vmatprep.subr.mxu0 0.0
  %658 = vmatpush2.msra.mxu0 0.0
  %659 = vmatprep.subr.mxu0 0.0
  %660 = vmatpush2.msra.mxu0 0.0
  %661 = vmatprep.subr.mxu0 0.0
  %662 = vmatpush2.msra.mxu0 0.0
  %663 = vmatprep.subr.mxu0 0.0
  %664 = vmatpush2.msra.mxu0 0.0
  %665 = vmatprep.subr.mxu0 0.0
  %666 = vmatpush2.msra.mxu0 0.0
  %667 = vmatprep.subr.mxu0 0.0
  %668 = vmatpush2.msra.mxu0 0.0
  %669 = vmatprep.subr.mxu0 0.0
  %670 = vmatpush2.msra.mxu0 0.0
  %671 = vmatprep.subr.mxu0 0.0
  %672 = vmatpush2.msra.mxu0 0.0
  %673 = vmatprep.subr.mxu0 0.0
  %674 = vmatpush2.msra.mxu0 0.0
  %675 = vmatprep.subr.mxu0 0.0
  %676 = vmatpush2.msra.mxu0 0.0
  %677 = vmatprep.subr.mxu0 0.0
  %678 = vmatpush2.msra.mxu0 0.0
  %679 = vmatprep.subr.mxu0 0.0
  %680 = vmatpush2.msra.mxu0 0.0
  %681 = vmatprep.mubr.f32.mxu0 0.0
  %682 = vmatmul.mubr.f32.gmra.mxu0 %v570
  %v683 = vpop.f32.mrf.mxu0
  %v684 = vadd.f32 %v567, %v683
  %v685 = vpop.f32.mrf.mxu0
  %686 = vmatprep.mubr.f32.mxu0 0.0
  %687 = vmatmul.mubr.f32.gmra.mxu0 %v573
  %v688 = vpop.f32.mrf.mxu0
  %v689 = vadd.f32 %v567, %v688
  %v690 = vpop.f32.mrf.mxu0
  %691 = vmatprep.mubr.f32.mxu0 0.0
  %692 = vmatmul.mubr.f32.gmra.mxu0 %v576
  %v693 = vpop.f32.mrf.mxu0
  %v694 = vadd.f32 %v567, %v693
  %v695 = vpop.f32.mrf.mxu0
  %696 = vmatprep.mubr.f32.mxu0 0.0
  %697 = vmatmul.mubr.f32.gmra.mxu0 %v579
  %v698 = vpop.f32.mrf.mxu0
  %v699 = vadd.f32 %v567, %v698
  %v700 = vpop.f32.mrf.mxu0
  %701 = vmatprep.mubr.f32.mxu0 0.0
  %702 = vmatmul.mubr.f32.gmra.mxu0 %v582
  %v703 = vpop.f32.mrf.mxu0
  %v704 = vadd.f32 %v567, %v703
  %v705 = vpop.f32.mrf.mxu0
  %706 = vmatprep.mubr.f32.mxu0 0.0
  %707 = vmatmul.mubr.f32.gmra.mxu0 %v585
  %v708 = vpop.f32.mrf.mxu0
  %v709 = vadd.f32 %v567, %v708
  %v710 = vpop.f32.mrf.mxu0
  %711 = vmatprep.mubr.f32.mxu0 0.0
  %712 = vmatmul.mubr.f32.gmra.mxu0 %v588
  %v713 = vpop.f32.mrf.mxu0
  %v714 = vadd.f32 %v567, %v713
  %v715 = vpop.f32.mrf.mxu0
  %716 = vmatprep.mubr.f32.mxu0 0.0
  %717 = vmatmul.mubr.f32.gmra.mxu0 %v591
  %v718 = vpop.f32.mrf.mxu0
  %v719 = vadd.f32 %v567, %v718
  %v720 = vpop.f32.mrf.mxu0
  %721 = vmatprep.mubr.f32.mxu0 0.0
  %722 = vmatmul.mubr.f32.gmra.mxu0 %v594
  %v723 = vpop.f32.mrf.mxu0
  %v724 = vadd.f32 %v567, %v723
  %v725 = vpop.f32.mrf.mxu0
  %726 = vmatprep.mubr.f32.mxu0 0.0
  %727 = vmatmul.mubr.f32.gmra.mxu0 %v597
  %v728 = vpop.f32.mrf.mxu0
  %v729 = vadd.f32 %v567, %v728
  %v730 = vpop.f32.mrf.mxu0
  %731 = vmatprep.mubr.f32.mxu0 0.0
  %732 = vmatmul.mubr.f32.gmra.mxu0 %v600
  %v733 = vpop.f32.mrf.mxu0
  %v734 = vadd.f32 %v567, %v733
  %v735 = vpop.f32.mrf.mxu0
  %736 = vmatprep.mubr.f32.mxu0 0.0
  %737 = vmatmul.mubr.f32.gmra.mxu0 %v603
  %v738 = vpop.f32.mrf.mxu0
  %v739 = vadd.f32 %v567, %v738
  %v740 = vpop.f32.mrf.mxu0
  %741 = vmatprep.mubr.f32.mxu0 0.0
  %742 = vmatmul.mubr.f32.gmra.mxu0 %v606
  %v743 = vpop.f32.mrf.mxu0
  %v744 = vadd.f32 %v567, %v743
  %v745 = vpop.f32.mrf.mxu0
  %746 = vmatprep.mubr.f32.mxu0 0.0
  %747 = vmatmul.mubr.f32.gmra.mxu0 %v609
  %v748 = vpop.f32.mrf.mxu0
  %v749 = vadd.f32 %v567, %v748
  %v750 = vpop.f32.mrf.mxu0
  %751 = vmatprep.mubr.f32.mxu0 0.0
  %752 = vmatmul.mubr.f32.gmra.mxu0 %v612
  %v753 = vpop.f32.mrf.mxu0
  %v754 = vadd.f32 %v567, %v753
  %v755 = vpop.f32.mrf.mxu0
  %756 = vmatprep.mubr.f32.mxu0 0.0
  %757 = vmatmul.mubr.f32.gmra.mxu0 %v615
  %v758 = vpop.f32.mrf.mxu0
  %v759 = vadd.f32 %v567, %v758
  %v760 = vpop.f32.mrf.mxu0
  %761 = vdwg.mxu0
  %v762 = vmax.f32 %v684, 0.0
  %v763 = vmax.f32 %v689, 0.0
  %v764 = vmax.f32 %v694, 0.0
  %v765 = vmax.f32 %v699, 0.0
  %v766 = vmax.f32 %v704, 0.0
  %v767 = vmax.f32 %v709, 0.0
  %v768 = vmax.f32 %v714, 0.0
  %v769 = vmax.f32 %v719, 0.0
  %v770 = vmax.f32 %v724, 0.0
  %v771 = vmax.f32 %v729, 0.0
  %v772 = vmax.f32 %v734, 0.0
  %v773 = vmax.f32 %v739, 0.0
  %v774 = vmax.f32 %v744, 0.0
  %v775 = vmax.f32 %v749, 0.0
  %v776 = vmax.f32 %v754, 0.0
  %v777 = vmax.f32 %v759, 0.0
  %v778 = vmax.f32 %v762, %v764
  %v779 = vmax.f32 %v763, %v765
  %v780 = vmax.f32 %v778, %v766
  %v781 = vmax.f32 %v779, %v767
  %v782 = vmax.f32 %v780, %v768
  %v783 = vmax.f32 %v781, %v769
  %v784 = vmax.f32 %v782, %v770
  %v785 = vmax.f32 %v783, %v771
  %v786 = vmax.f32 %v784, %v772
  %v787 = vmax.f32 %v785, %v773
  %v788 = vmax.f32 %v786, %v774
  %v789 = vmax.f32 %v787, %v775
  %v790 = vmax.f32 %v788, %v776
  %v791 = vmax.f32 %v789, %v777
  %792 = vst.msk [vmem:[%s4] sm:$0xff] %vm119, %v790
  %793 = vst.msk [vmem:[%s4 + $0x8] sm:$0xff] %vm119, %v791
  // Predicated region
  $region18: #{pointnet_pp_forward.2} parent=0 // pred_check
    _
  $region19: #{pointnet_pp_forward.2} parent=0 // pred_check_branch
    %795 = sbr.rel (0) target = $region21
  $region20: #{pointnet_pp_forward.2} parent=0 // pred_region
    _
  $region21: #{pointnet_pp_forward.2} parent=0 // pred_fallthru
    _
  // Predicated region
  $region22: #{pointnet_pp_forward.2} parent=0 // pred_check
    _
  $region23: #{pointnet_pp_forward.2} parent=0 // pred_check_branch
    %797 = sbr.rel (0) target = $region25
  $region24: #{pointnet_pp_forward.2} parent=0 // pred_region
    _
  $region25: #{pointnet_pp_forward.2} parent=0 // pred_fallthru
    _

// kernel: pointnet_pp_forward.3
$region0: #{pointnet_pp_forward.3}
  #allocation0 [shape = 'u32[]', space=smem, size = 0x4, offset = 0x4, fixed_abs, tag = 'smem constant byte address 0x4 - core index']
  #allocation1 [shape = 'u32[144,128]{1,0:T(1,128)}', space=vmem, size = 0x12000, scoped, tag = 'internal scratch']
  #allocation2 [shape = 'f32[2,256]{1,0:T(2,128)}', space=vmem, size = 0x800, scoped, tag = 'scratch operand']
  %s0 = inlined_call_operand.vmem [shape: s32[64,1], index: 0, kind: input, shape index: {}]
  %s1 = inlined_call_operand.vmem [shape: f32[16,40], index: 1, kind: input, shape index: {}]
  %s2 = inlined_call_operand.vmem [shape: f32[64,40], index: 2, kind: input, shape index: {}]
  %s3 = inlined_call_operand.vmem [shape: f32[352,64], index: 3, kind: input, shape index: {}]
  %s4 = inlined_call_operand.hbm [shape: f32[2,64], index: 4, kind: output, shape index: {}]
  %s5 = sld [smem:[#allocation0]]
  $region26: #{pointnet_pp_forward.3} parent=0
    _
  %s7 = ssub.s32 1, %s5
  %s8 = scalar_select 0, %s7, %s5
  $region1: #{pointnet_pp_forward.3} parent=0
    #allocation3 [shape = 'u8[1024]{0}', space=vmem, size = 0x400, scoped, tag = 'output window, operand 0, single buffered']
    #allocation4 [shape = 's32[1]{0}', space=sflag, size = 0x4, scoped, tag = 'scoped memory for pointnet_pp_forward.3']
    %9 = vsyncpa [#allocation4], 0
    // Predicated region
    $region2: #{pointnet_pp_forward.3} parent=1 // pred_check
      _
    $region3: #{pointnet_pp_forward.3} parent=1 // pred_check_branch
      %11 = sbr.rel (0) target = $region5
    $region4: #{pointnet_pp_forward.3} parent=1 // pred_region
      _
    $region5: #{pointnet_pp_forward.3} parent=1 // pred_fallthru
      _
    // Predicated region
    $region6: #{pointnet_pp_forward.3} parent=1 // pred_check
      _
    $region7: #{pointnet_pp_forward.3} parent=1 // pred_check_branch
      %13 = sbr.rel (0) target = $region9
    $region8: #{pointnet_pp_forward.3} parent=1 // pred_region
      _
    $region9: #{pointnet_pp_forward.3} parent=1 // pred_fallthru
      _
    // Predicated region
    $region10: #{pointnet_pp_forward.3} parent=1 // pred_check
      _
    $region11: #{pointnet_pp_forward.3} parent=1 // pred_check_branch
      %15 = sbr.rel (0) target = $region13
    $region12: #{pointnet_pp_forward.3} parent=1 // pred_region
      _
    $region13: #{pointnet_pp_forward.3} parent=1 // pred_fallthru
      _
    // Predicated region
    $region14: #{pointnet_pp_forward.3} parent=1 // pred_check
      _
    $region15: #{pointnet_pp_forward.3} parent=1 // pred_check_branch
      %17 = sbr.rel (0) target = $region17
    $region16: #{pointnet_pp_forward.3} parent=1 // pred_region
      _
    $region17: #{pointnet_pp_forward.3} parent=1 // pred_fallthru
      _
    %v18 = vlaneseq
    %v19 = vand.u32 %v18, 127
    %v20 = vld [vmem:[%s0] sm:$0xff]
    %v21 = vld [vmem:[%s0 + $0x8] sm:$0xff]
    %v22 = vld [vmem:[%s0 + $0x10] sm:$0xff]
    %v23 = vld [vmem:[%s0 + $0x18] sm:$0xff]
    %v24 = vld [vmem:[%s0 + $0x20] sm:$0xff]
    %v25 = vld [vmem:[%s0 + $0x28] sm:$0xff]
    %v26 = vld [vmem:[%s0 + $0x30] sm:$0xff]
    %v27 = vld [vmem:[%s0 + $0x38] sm:$0xff]
    %28 = vset.pattern.permute.xlu0 0
    %29 = vperm.xlu0 %28, %v20
    %v30 = vpop.permute.xlu0 %29
    %31 = vset.pattern.permute.xlu0 0
    %32 = vperm.xlu0 %31, %v21
    %v33 = vpop.permute.xlu0 %32
    %34 = vset.pattern.permute.xlu0 0
    %35 = vperm.xlu0 %34, %v22
    %v36 = vpop.permute.xlu0 %35
    %37 = vset.pattern.permute.xlu0 0
    %38 = vperm.xlu0 %37, %v23
    %v39 = vpop.permute.xlu0 %38
    %40 = vset.pattern.permute.xlu0 0
    %41 = vperm.xlu0 %40, %v24
    %v42 = vpop.permute.xlu0 %41
    %43 = vset.pattern.permute.xlu0 0
    %44 = vperm.xlu0 %43, %v25
    %v45 = vpop.permute.xlu0 %44
    %46 = vset.pattern.permute.xlu0 0
    %47 = vperm.xlu0 %46, %v26
    %v48 = vpop.permute.xlu0 %47
    %49 = vset.pattern.permute.xlu0 0
    %50 = vperm.xlu0 %49, %v27
    %v51 = vpop.permute.xlu0 %50
    %vm52 = vcmp.eq.s32.totalorder %v30, %v19
    %vm53 = vcmp.eq.s32.totalorder %v33, %v19
    %vm54 = vcmp.eq.s32.totalorder %v36, %v19
    %vm55 = vcmp.eq.s32.totalorder %v39, %v19
    %vm56 = vcmp.eq.s32.totalorder %v42, %v19
    %vm57 = vcmp.eq.s32.totalorder %v45, %v19
    %vm58 = vcmp.eq.s32.totalorder %v48, %v19
    %vm59 = vcmp.eq.s32.totalorder %v51, %v19
    %v60 = vsel %vm52, 1.0, 0.0
    %v61 = vsel %vm53, 1.0, 0.0
    %v62 = vsel %vm54, 1.0, 0.0
    %v63 = vsel %vm55, 1.0, 0.0
    %v64 = vsel %vm56, 1.0, 0.0
    %v65 = vsel %vm57, 1.0, 0.0
    %v66 = vsel %vm58, 1.0, 0.0
    %v67 = vsel %vm59, 1.0, 0.0
    %v68 = vld [vmem:[%s1] sm:$0xff]
    %v69 = vld [vmem:[%s1 + $0x8] sm:$0xff]
    %vm70 = vcmask 130048
    %v72 = vsel %vm70, %v60, 0
    %v75 = vsel %vm70, %v61, 0
    %v78 = vsel %vm70, %v62, 0
    %v81 = vsel %vm70, %v63, 0
    %v84 = vsel %vm70, %v64, 0
    %v87 = vsel %vm70, %v65, 0
    %v90 = vsel %vm70, %v66, 0
    %v93 = vsel %vm70, %v67, 0
    %95 = vmatprep.subr.mxu0 0.0
    %96 = vmatpush1.msra.mxu0 0.0
    %97 = vmatprep.subr.mxu0 0.0
    %98 = vmatpush1.msra.mxu0 0.0
    %99 = vmatprep.subr.mxu0 0.0
    %100 = vmatpush1.msra.mxu0 0.0
    %101 = vmatprep.subr.mxu0 0.0
    %102 = vmatpush1.msra.mxu0 0.0
    %103 = vmatprep.subr.mxu0 0.0
    %104 = vmatpush1.msra.mxu0 0.0
    %105 = vmatprep.subr.mxu0 0.0
    %106 = vmatpush1.msra.mxu0 0.0
    %107 = vmatprep.subr.mxu0 0.0
    %108 = vmatpush1.msra.mxu0 0.0
    %109 = vmatprep.subr.mxu0 0.0
    %110 = vmatpush1.msra.mxu0 0.0
    %111 = vmatprep.subr.mxu0 0.0
    %112 = vmatpush1.msra.mxu0 0.0
    %113 = vmatprep.subr.mxu0 0.0
    %114 = vmatpush1.msra.mxu0 0.0
    %115 = vmatprep.subr.mxu0 0.0
    %116 = vmatpush1.msra.mxu0 0.0
    %117 = vmatprep.subr.mxu0 0.0
    %118 = vmatpush1.msra.mxu0 0.0
    %119 = vmatprep.subr.mxu0 0.0
    %120 = vmatpush1.msra.mxu0 0.0
    %121 = vmatprep.subr.mxu0 0.0
    %122 = vmatpush1.msra.mxu0 0.0
    %123 = vmatprep.subr.mxu0 0.0
    %124 = vmatpush1.msra.mxu0 %v69
    %125 = vmatprep.subr.mxu0 0.0
    %126 = vmatpush1.msra.mxu0 %v68
    %127 = vmatprep.subr.mxu0 0.0
    %128 = vmatpush2.msra.mxu0 0.0
    %129 = vmatprep.subr.mxu0 0.0
    %130 = vmatpush2.msra.mxu0 0.0
    %131 = vmatprep.subr.mxu0 0.0
    %132 = vmatpush2.msra.mxu0 0.0
    %133 = vmatprep.subr.mxu0 0.0
    %134 = vmatpush2.msra.mxu0 0.0
    %135 = vmatprep.subr.mxu0 0.0
    %136 = vmatpush2.msra.mxu0 0.0
    %137 = vmatprep.subr.mxu0 0.0
    %138 = vmatpush2.msra.mxu0 0.0
    %139 = vmatprep.subr.mxu0 0.0
    %140 = vmatpush2.msra.mxu0 0.0
    %141 = vmatprep.subr.mxu0 0.0
    %142 = vmatpush2.msra.mxu0 0.0
    %143 = vmatprep.subr.mxu0 0.0
    %144 = vmatpush2.msra.mxu0 0.0
    %145 = vmatprep.subr.mxu0 0.0
    %146 = vmatpush2.msra.mxu0 0.0
    %147 = vmatprep.subr.mxu0 0.0
    %148 = vmatpush2.msra.mxu0 0.0
    %149 = vmatprep.subr.mxu0 0.0
    %150 = vmatpush2.msra.mxu0 0.0
    %151 = vmatprep.subr.mxu0 0.0
    %152 = vmatpush2.msra.mxu0 0.0
    %153 = vmatprep.subr.mxu0 0.0
    %154 = vmatpush2.msra.mxu0 0.0
    %155 = vmatprep.subr.mxu0 0.0
    %156 = vmatpush2.msra.mxu0 0.0
    %157 = vmatprep.subr.mxu0 0.0
    %158 = vmatpush2.msra.mxu0 0.0
    %159 = vmatprep.mubr.f32.mxu0 0.0
    %160 = vmatmul.mubr.f32.gmra.mxu0 %v72
    %v161 = vpop.f32.mrf.mxu0
    %v162 = vadd.f32 0.0, %v161
    %v163 = vpop.f32.mrf.mxu0
    %164 = vmatprep.mubr.f32.mxu0 0.0
    %165 = vmatmul.mubr.f32.gmra.mxu0 %v75
    %v166 = vpop.f32.mrf.mxu0
    %v167 = vadd.f32 0.0, %v166
    %v168 = vpop.f32.mrf.mxu0
    %169 = vmatprep.mubr.f32.mxu0 0.0
    %170 = vmatmul.mubr.f32.gmra.mxu0 %v78
    %v171 = vpop.f32.mrf.mxu0
    %v172 = vadd.f32 0.0, %v171
    %v173 = vpop.f32.mrf.mxu0
    %174 = vmatprep.mubr.f32.mxu0 0.0
    %175 = vmatmul.mubr.f32.gmra.mxu0 %v81
    %v176 = vpop.f32.mrf.mxu0
    %v177 = vadd.f32 0.0, %v176
    %v178 = vpop.f32.mrf.mxu0
    %179 = vmatprep.mubr.f32.mxu0 0.0
    %180 = vmatmul.mubr.f32.gmra.mxu0 %v84
    %v181 = vpop.f32.mrf.mxu0
    %v182 = vadd.f32 0.0, %v181
    %v183 = vpop.f32.mrf.mxu0
    %184 = vmatprep.mubr.f32.mxu0 0.0
    %185 = vmatmul.mubr.f32.gmra.mxu0 %v87
    %v186 = vpop.f32.mrf.mxu0
    %v187 = vadd.f32 0.0, %v186
    %v188 = vpop.f32.mrf.mxu0
    %189 = vmatprep.mubr.f32.mxu0 0.0
    %190 = vmatmul.mubr.f32.gmra.mxu0 %v90
    %v191 = vpop.f32.mrf.mxu0
    %v192 = vadd.f32 0.0, %v191
    %v193 = vpop.f32.mrf.mxu0
    %194 = vmatprep.mubr.f32.mxu0 0.0
    %195 = vmatmul.mubr.f32.gmra.mxu0 %v93
    %v196 = vpop.f32.mrf.mxu0
    %v197 = vadd.f32 0.0, %v196
    %v198 = vpop.f32.mrf.mxu0
    %199 = vdwg.mxu0
    %v200 = vld [vmem:[%s2] sm:$0xff]
    %v201 = vld [vmem:[%s2 + $0x8] sm:$0xff]
    %v202 = vld [vmem:[%s2 + $0x10] sm:$0xff]
    %v203 = vld [vmem:[%s2 + $0x18] sm:$0xff]
    %v204 = vld [vmem:[%s2 + $0x20] sm:$0xff]
    %v205 = vld [vmem:[%s2 + $0x28] sm:$0xff]
    %v206 = vld [vmem:[%s2 + $0x30] sm:$0xff]
    %v207 = vld [vmem:[%s2 + $0x38] sm:$0xff]
    %v208 = vsub.f32 %v162, %v200
    %v209 = vsub.f32 %v167, %v201
    %v210 = vsub.f32 %v172, %v202
    %v211 = vsub.f32 %v177, %v203
    %v212 = vsub.f32 %v182, %v204
    %v213 = vsub.f32 %v187, %v205
    %v214 = vsub.f32 %v192, %v206
    %v215 = vsub.f32 %v197, %v207
    %v216 = vld [vmem:[%s3] sm:$0xff]
    %v217 = vld [vmem:[%s3 + $0x8] sm:$0xff]
    %v218 = vld [vmem:[%s3 + $0x10] sm:$0xff]
    %v219 = vld [vmem:[%s3 + $0x18] sm:$0xff]
    %v220 = vld [vmem:[%s3 + $0x20] sm:$0xff]
    %v221 = vld [vmem:[%s3 + $0x28] sm:$0x1]
    %v222 = vlaneseq
    %v223 = vshrl.u32 %v222, 7
    %v224 = vsub.s32 0, %v223
    %v225 = vrot.slane %v221, %v224
    %vm226 = vcmask 326656
    %v228 = vsel %vm226, %v208, 0
    %v231 = vsel %vm226, %v209, 0
    %v234 = vsel %vm226, %v210, 0
    %v237 = vsel %vm226, %v211, 0
    %v240 = vsel %vm226, %v212, 0
    %v243 = vsel %vm226, %v213, 0
    %v246 = vsel %vm226, %v214, 0
    %v249 = vsel %vm226, %v215, 0
    %251 = vmatprep.subr.mxu0 0.0
    %252 = vmatpush1.msra.mxu0 0.0
    %253 = vmatprep.subr.mxu0 0.0
    %254 = vmatpush1.msra.mxu0 0.0
    %255 = vmatprep.subr.mxu0 0.0
    %256 = vmatpush1.msra.mxu0 0.0
    %257 = vmatprep.subr.mxu0 0.0
    %258 = vmatpush1.msra.mxu0 0.0
    %259 = vmatprep.subr.mxu0 0.0
    %260 = vmatpush1.msra.mxu0 0.0
    %261 = vmatprep.subr.mxu0 0.0
    %262 = vmatpush1.msra.mxu0 0.0
    %263 = vmatprep.subr.mxu0 0.0
    %264 = vmatpush1.msra.mxu0 0.0
    %265 = vmatprep.subr.mxu0 0.0
    %266 = vmatpush1.msra.mxu0 0.0
    %267 = vmatprep.subr.mxu0 0.0
    %268 = vmatpush1.msra.mxu0 0.0
    %269 = vmatprep.subr.mxu0 0.0
    %270 = vmatpush1.msra.mxu0 0.0
    %271 = vmatprep.subr.mxu0 0.0
    %272 = vmatpush1.msra.mxu0 0.0
    %273 = vmatprep.subr.mxu0 0.0
    %274 = vmatpush1.msra.mxu0 %v220
    %275 = vmatprep.subr.mxu0 0.0
    %276 = vmatpush1.msra.mxu0 %v219
    %277 = vmatprep.subr.mxu0 0.0
    %278 = vmatpush1.msra.mxu0 %v218
    %279 = vmatprep.subr.mxu0 0.0
    %280 = vmatpush1.msra.mxu0 %v217
    %281 = vmatprep.subr.mxu0 0.0
    %282 = vmatpush1.msra.mxu0 %v216
    %283 = vmatprep.subr.mxu0 0.0
    %284 = vmatpush2.msra.mxu0 0.0
    %285 = vmatprep.subr.mxu0 0.0
    %286 = vmatpush2.msra.mxu0 0.0
    %287 = vmatprep.subr.mxu0 0.0
    %288 = vmatpush2.msra.mxu0 0.0
    %289 = vmatprep.subr.mxu0 0.0
    %290 = vmatpush2.msra.mxu0 0.0
    %291 = vmatprep.subr.mxu0 0.0
    %292 = vmatpush2.msra.mxu0 0.0
    %293 = vmatprep.subr.mxu0 0.0
    %294 = vmatpush2.msra.mxu0 0.0
    %295 = vmatprep.subr.mxu0 0.0
    %296 = vmatpush2.msra.mxu0 0.0
    %297 = vmatprep.subr.mxu0 0.0
    %298 = vmatpush2.msra.mxu0 0.0
    %299 = vmatprep.subr.mxu0 0.0
    %300 = vmatpush2.msra.mxu0 0.0
    %301 = vmatprep.subr.mxu0 0.0
    %302 = vmatpush2.msra.mxu0 0.0
    %303 = vmatprep.subr.mxu0 0.0
    %304 = vmatpush2.msra.mxu0 0.0
    %305 = vmatprep.subr.mxu0 0.0
    %306 = vmatpush2.msra.mxu0 0.0
    %307 = vmatprep.subr.mxu0 0.0
    %308 = vmatpush2.msra.mxu0 0.0
    %309 = vmatprep.subr.mxu0 0.0
    %310 = vmatpush2.msra.mxu0 0.0
    %311 = vmatprep.subr.mxu0 0.0
    %312 = vmatpush2.msra.mxu0 0.0
    %313 = vmatprep.subr.mxu0 0.0
    %314 = vmatpush2.msra.mxu0 0.0
    %315 = vmatprep.mubr.f32.mxu0 0.0
    %316 = vmatmul.mubr.f32.gmra.mxu0 %v228
    %v317 = vpop.f32.mrf.mxu0
    %v318 = vadd.f32 %v225, %v317
    %v319 = vpop.f32.mrf.mxu0
    %320 = vmatprep.mubr.f32.mxu0 0.0
    %321 = vmatmul.mubr.f32.gmra.mxu0 %v231
    %v322 = vpop.f32.mrf.mxu0
    %v323 = vadd.f32 %v225, %v322
    %v324 = vpop.f32.mrf.mxu0
    %325 = vmatprep.mubr.f32.mxu0 0.0
    %326 = vmatmul.mubr.f32.gmra.mxu0 %v234
    %v327 = vpop.f32.mrf.mxu0
    %v328 = vadd.f32 %v225, %v327
    %v329 = vpop.f32.mrf.mxu0
    %330 = vmatprep.mubr.f32.mxu0 0.0
    %331 = vmatmul.mubr.f32.gmra.mxu0 %v237
    %v332 = vpop.f32.mrf.mxu0
    %v333 = vadd.f32 %v225, %v332
    %v334 = vpop.f32.mrf.mxu0
    %335 = vmatprep.mubr.f32.mxu0 0.0
    %336 = vmatmul.mubr.f32.gmra.mxu0 %v240
    %v337 = vpop.f32.mrf.mxu0
    %v338 = vadd.f32 %v225, %v337
    %v339 = vpop.f32.mrf.mxu0
    %340 = vmatprep.mubr.f32.mxu0 0.0
    %341 = vmatmul.mubr.f32.gmra.mxu0 %v243
    %v342 = vpop.f32.mrf.mxu0
    %v343 = vadd.f32 %v225, %v342
    %v344 = vpop.f32.mrf.mxu0
    %345 = vmatprep.mubr.f32.mxu0 0.0
    %346 = vmatmul.mubr.f32.gmra.mxu0 %v246
    %v347 = vpop.f32.mrf.mxu0
    %v348 = vadd.f32 %v225, %v347
    %v349 = vpop.f32.mrf.mxu0
    %350 = vmatprep.mubr.f32.mxu0 0.0
    %351 = vmatmul.mubr.f32.gmra.mxu0 %v249
    %v352 = vpop.f32.mrf.mxu0
    %v353 = vadd.f32 %v225, %v352
    %v354 = vpop.f32.mrf.mxu0
    %355 = vdwg.mxu0
    %v356 = vmax.f32 %v318, 0.0
    %v357 = vmax.f32 %v323, 0.0
    %v358 = vmax.f32 %v328, 0.0
    %v359 = vmax.f32 %v333, 0.0
    %v360 = vmax.f32 %v338, 0.0
    %v361 = vmax.f32 %v343, 0.0
    %v362 = vmax.f32 %v348, 0.0
    %v363 = vmax.f32 %v353, 0.0
    %v364 = vld [vmem:[%s3 + $0x30] sm:$0xff]
    %v365 = vld [vmem:[%s3 + $0x38] sm:$0xff]
    %v366 = vld [vmem:[%s3 + $0x40] sm:$0xff]
    %v367 = vld [vmem:[%s3 + $0x48] sm:$0xff]
    %v368 = vld [vmem:[%s3 + $0x50] sm:$0x1]
    %v369 = vlaneseq
    %v370 = vshrl.u32 %v369, 7
    %v371 = vsub.s32 0, %v370
    %v372 = vrot.slane %v368, %v371
    %vm373 = vcmask 261120
    %v375 = vsel %vm373, %v356, 0
    %v378 = vsel %vm373, %v357, 0
    %v381 = vsel %vm373, %v358, 0
    %v384 = vsel %vm373, %v359, 0
    %v387 = vsel %vm373, %v360, 0
    %v390 = vsel %vm373, %v361, 0
    %v393 = vsel %vm373, %v362, 0
    %v396 = vsel %vm373, %v363, 0
    %398 = vmatprep.subr.mxu0 0.0
    %399 = vmatpush1.msra.mxu0 0.0
    %400 = vmatprep.subr.mxu0 0.0
    %401 = vmatpush1.msra.mxu0 0.0
    %402 = vmatprep.subr.mxu0 0.0
    %403 = vmatpush1.msra.mxu0 0.0
    %404 = vmatprep.subr.mxu0 0.0
    %405 = vmatpush1.msra.mxu0 0.0
    %406 = vmatprep.subr.mxu0 0.0
    %407 = vmatpush1.msra.mxu0 0.0
    %408 = vmatprep.subr.mxu0 0.0
    %409 = vmatpush1.msra.mxu0 0.0
    %410 = vmatprep.subr.mxu0 0.0
    %411 = vmatpush1.msra.mxu0 0.0
    %412 = vmatprep.subr.mxu0 0.0
    %413 = vmatpush1.msra.mxu0 0.0
    %414 = vmatprep.subr.mxu0 0.0
    %415 = vmatpush1.msra.mxu0 0.0
    %416 = vmatprep.subr.mxu0 0.0
    %417 = vmatpush1.msra.mxu0 0.0
    %418 = vmatprep.subr.mxu0 0.0
    %419 = vmatpush1.msra.mxu0 0.0
    %420 = vmatprep.subr.mxu0 0.0
    %421 = vmatpush1.msra.mxu0 0.0
    %422 = vmatprep.subr.mxu0 0.0
    %423 = vmatpush1.msra.mxu0 %v367
    %424 = vmatprep.subr.mxu0 0.0
    %425 = vmatpush1.msra.mxu0 %v366
    %426 = vmatprep.subr.mxu0 0.0
    %427 = vmatpush1.msra.mxu0 %v365
    %428 = vmatprep.subr.mxu0 0.0
    %429 = vmatpush1.msra.mxu0 %v364
    %430 = vmatprep.subr.mxu0 0.0
    %431 = vmatpush2.msra.mxu0 0.0
    %432 = vmatprep.subr.mxu0 0.0
    %433 = vmatpush2.msra.mxu0 0.0
    %434 = vmatprep.subr.mxu0 0.0
    %435 = vmatpush2.msra.mxu0 0.0
    %436 = vmatprep.subr.mxu0 0.0
    %437 = vmatpush2.msra.mxu0 0.0
    %438 = vmatprep.subr.mxu0 0.0
    %439 = vmatpush2.msra.mxu0 0.0
    %440 = vmatprep.subr.mxu0 0.0
    %441 = vmatpush2.msra.mxu0 0.0
    %442 = vmatprep.subr.mxu0 0.0
    %443 = vmatpush2.msra.mxu0 0.0
    %444 = vmatprep.subr.mxu0 0.0
    %445 = vmatpush2.msra.mxu0 0.0
    %446 = vmatprep.subr.mxu0 0.0
    %447 = vmatpush2.msra.mxu0 0.0
    %448 = vmatprep.subr.mxu0 0.0
    %449 = vmatpush2.msra.mxu0 0.0
    %450 = vmatprep.subr.mxu0 0.0
    %451 = vmatpush2.msra.mxu0 0.0
    %452 = vmatprep.subr.mxu0 0.0
    %453 = vmatpush2.msra.mxu0 0.0
    %454 = vmatprep.subr.mxu0 0.0
    %455 = vmatpush2.msra.mxu0 0.0
    %456 = vmatprep.subr.mxu0 0.0
    %457 = vmatpush2.msra.mxu0 0.0
    %458 = vmatprep.subr.mxu0 0.0
    %459 = vmatpush2.msra.mxu0 0.0
    %460 = vmatprep.subr.mxu0 0.0
    %461 = vmatpush2.msra.mxu0 0.0
    %462 = vmatprep.mubr.f32.mxu0 0.0
    %463 = vmatmul.mubr.f32.gmra.mxu0 %v375
    %v464 = vpop.f32.mrf.mxu0
    %v465 = vadd.f32 %v372, %v464
    %v466 = vpop.f32.mrf.mxu0
    %467 = vmatprep.mubr.f32.mxu0 0.0
    %468 = vmatmul.mubr.f32.gmra.mxu0 %v378
    %v469 = vpop.f32.mrf.mxu0
    %v470 = vadd.f32 %v372, %v469
    %v471 = vpop.f32.mrf.mxu0
    %472 = vmatprep.mubr.f32.mxu0 0.0
    %473 = vmatmul.mubr.f32.gmra.mxu0 %v381
    %v474 = vpop.f32.mrf.mxu0
    %v475 = vadd.f32 %v372, %v474
    %v476 = vpop.f32.mrf.mxu0
    %477 = vmatprep.mubr.f32.mxu0 0.0
    %478 = vmatmul.mubr.f32.gmra.mxu0 %v384
    %v479 = vpop.f32.mrf.mxu0
    %v480 = vadd.f32 %v372, %v479
    %v481 = vpop.f32.mrf.mxu0
    %482 = vmatprep.mubr.f32.mxu0 0.0
    %483 = vmatmul.mubr.f32.gmra.mxu0 %v387
    %v484 = vpop.f32.mrf.mxu0
    %v485 = vadd.f32 %v372, %v484
    %v486 = vpop.f32.mrf.mxu0
    %487 = vmatprep.mubr.f32.mxu0 0.0
    %488 = vmatmul.mubr.f32.gmra.mxu0 %v390
    %v489 = vpop.f32.mrf.mxu0
    %v490 = vadd.f32 %v372, %v489
    %v491 = vpop.f32.mrf.mxu0
    %492 = vmatprep.mubr.f32.mxu0 0.0
    %493 = vmatmul.mubr.f32.gmra.mxu0 %v393
    %v494 = vpop.f32.mrf.mxu0
    %v495 = vadd.f32 %v372, %v494
    %v496 = vpop.f32.mrf.mxu0
    %497 = vmatprep.mubr.f32.mxu0 0.0
    %498 = vmatmul.mubr.f32.gmra.mxu0 %v396
    %v499 = vpop.f32.mrf.mxu0
    %v500 = vadd.f32 %v372, %v499
    %v501 = vpop.f32.mrf.mxu0
    %502 = vdwg.mxu0
    %v503 = vmax.f32 %v465, 0.0
    %v504 = vmax.f32 %v470, 0.0
    %v505 = vmax.f32 %v475, 0.0
    %v506 = vmax.f32 %v480, 0.0
    %v507 = vmax.f32 %v485, 0.0
    %v508 = vmax.f32 %v490, 0.0
    %v509 = vmax.f32 %v495, 0.0
    %v510 = vmax.f32 %v500, 0.0
    %v511 = vmax.f32 %v503, %v504
    %v512 = vmax.f32 %v511, %v505
    %v513 = vmax.f32 %v512, %v506
    %v514 = vmax.f32 %v513, %v507
    %v515 = vmax.f32 %v514, %v508
    %v516 = vmax.f32 %v515, %v509
    %v517 = vmax.f32 %v516, %v510
    %vm518 = vcmask 517120
    %519 = vst.msk [vmem:[#allocation2] sm:$0x3] %vm518, %v517
    %v522 = vunpack.c.l.s4 1983009808
    %v523 = vunpack.c.0.s8 %v522
    %v524 = vlaneseq
    %v525 = vshrl.u32 %v524, 7
    %v526 = vsub.s32 %v523, %v525
    %v527 = vrot.slane %v517, %v526
    %v528 = vcombine.high %v527, %v527
    %529 = vrot.lane.b32.xlu0 %v528, 64
    %v530 = vpop.permute.xlu0 %529
    %vm532 = vcmask 1041920
    %533 = vst.msk [vmem:[#allocation2] sm:$0x3] %vm532, %v530
    %v534 = vcombine.high %v517, %v517
    %v536 = vunpack.c.l.s4 1983009808
    %v537 = vunpack.c.0.s8 %v536
    %v538 = vlaneseq
    %v539 = vshrl.u32 %v538, 7
    %v540 = vsub.s32 %v537, %v539
    %v541 = vrot.slane %v534, %v540
    %543 = vst.msk [vmem:[#allocation2 + $0x2] sm:$0x3] %vm518, %v541
    %v544 = vcombine.high %v541, %v541
    %545 = vrot.lane.b32.xlu0 %v544, 64
    %v546 = vpop.permute.xlu0 %545
    %548 = vst.msk [vmem:[#allocation2 + $0x2] sm:$0x3] %vm532, %v546
    %v549 = vld [vmem:[%s3 + $0x58] sm:$0xff]
    %v550 = vld [vmem:[%s3 + $0x60] sm:$0xff]
    %v551 = vld [vmem:[%s3 + $0x68] sm:$0xff]
    %v552 = vld [vmem:[%s3 + $0x70] sm:$0xff]
    %v553 = vld [vmem:[%s3 + $0x78] sm:$0xff]
    %v554 = vld [vmem:[%s3 + $0x80] sm:$0xff]
    %v555 = vld [vmem:[%s3 + $0x88] sm:$0xff]
    %v556 = vld [vmem:[%s3 + $0x90] sm:$0xff]
    %v557 = vld [vmem:[%s3 + $0x98] sm:$0xff]
    %v558 = vld [vmem:[%s3 + $0xa0] sm:$0xff]
    %v559 = vld [vmem:[%s3 + $0xa8] sm:$0xff]
    %v560 = vld [vmem:[%s3 + $0xb0] sm:$0xff]
    %v561 = vld [vmem:[%s3 + $0xb8] sm:$0xff]
    %v562 = vld [vmem:[%s3 + $0xc0] sm:$0xff]
    %v563 = vld [vmem:[%s3 + $0xc8] sm:$0xff]
    %v564 = vld [vmem:[%s3 + $0xd0] sm:$0xff]
    %v565 = vld [vmem:[%s3 + $0xd8] sm:$0xff]
    %v566 = vld [vmem:[%s3 + $0xe0] sm:$0xff]
    %v567 = vld [vmem:[%s3 + $0xe8] sm:$0xff]
    %v568 = vld [vmem:[%s3 + $0xf0] sm:$0xff]
    %v569 = vld [vmem:[%s3 + $0xf8] sm:$0xff]
    %v570 = vld [vmem:[%s3 + $0x100] sm:$0xff]
    %v571 = vld [vmem:[%s3 + $0x108] sm:$0xff]
    %v572 = vld [vmem:[%s3 + $0x110] sm:$0xff]
    %v573 = vld [vmem:[%s3 + $0x118] sm:$0xff]
    %v574 = vld [vmem:[%s3 + $0x120] sm:$0xff]
    %v575 = vld [vmem:[%s3 + $0x128] sm:$0xff]
    %v576 = vld [vmem:[%s3 + $0x130] sm:$0xff]
    %v577 = vld [vmem:[%s3 + $0x138] sm:$0xff]
    %v578 = vld [vmem:[%s3 + $0x140] sm:$0xff]
    %v579 = vld [vmem:[%s3 + $0x148] sm:$0xff]
    %v580 = vld [vmem:[%s3 + $0x150] sm:$0xff]
    %v581 = vld [vmem:[%s3 + $0x158] sm:$0x1]
    %v582 = vld [vmem:[#allocation2] sm:$0xf]
    %v585 = vunpack.c.l.s4 1983009808
    %v586 = vunpack.c.0.s8 %v585
    %v587 = vlaneseq
    %v588 = vshrl.u32 %v587, 7
    %v589 = vsub.s32 %v586, %v588
    %v590 = vrot.slane %v582, %v589
    %v591 = vcombine.high %v590, %v590
    %594 = vmatprep.subr.mxu0 0.0
    %595 = vmatpush1.msra.mxu0 %v564
    %596 = vmatprep.subr.mxu0 0.0
    %597 = vmatpush1.msra.mxu0 %v563
    %598 = vmatprep.subr.mxu0 0.0
    %599 = vmatpush1.msra.mxu0 %v562
    %600 = vmatprep.subr.mxu0 0.0
    %601 = vmatpush1.msra.mxu0 %v561
    %602 = vmatprep.subr.mxu0 0.0
    %603 = vmatpush1.msra.mxu0 %v560
    %604 = vmatprep.subr.mxu0 0.0
    %605 = vmatpush1.msra.mxu0 %v559
    %606 = vmatprep.subr.mxu0 0.0
    %607 = vmatpush1.msra.mxu0 %v558
    %608 = vmatprep.subr.mxu0 0.0
    %609 = vmatpush1.msra.mxu0 %v557
    %610 = vmatprep.subr.mxu0 0.0
    %611 = vmatpush1.msra.mxu0 %v556
    %612 = vmatprep.subr.mxu0 0.0
    %613 = vmatpush1.msra.mxu0 %v555
    %614 = vmatprep.subr.mxu0 0.0
    %615 = vmatpush1.msra.mxu0 %v554
    %616 = vmatprep.subr.mxu0 0.0
    %617 = vmatpush1.msra.mxu0 %v553
    %618 = vmatprep.subr.mxu0 0.0
    %619 = vmatpush1.msra.mxu0 %v552
    %620 = vmatprep.subr.mxu0 0.0
    %621 = vmatpush1.msra.mxu0 %v551
    %622 = vmatprep.subr.mxu0 0.0
    %623 = vmatpush1.msra.mxu0 %v550
    %624 = vmatprep.subr.mxu0 0.0
    %625 = vmatpush1.msra.mxu0 %v549
    %626 = vmatprep.subr.mxu0 0.0
    %627 = vmatpush2.msra.mxu0 %v580
    %628 = vmatprep.subr.mxu0 0.0
    %629 = vmatpush2.msra.mxu0 %v579
    %630 = vmatprep.subr.mxu0 0.0
    %631 = vmatpush2.msra.mxu0 %v578
    %632 = vmatprep.subr.mxu0 0.0
    %633 = vmatpush2.msra.mxu0 %v577
    %634 = vmatprep.subr.mxu0 0.0
    %635 = vmatpush2.msra.mxu0 %v576
    %636 = vmatprep.subr.mxu0 0.0
    %637 = vmatpush2.msra.mxu0 %v575
    %638 = vmatprep.subr.mxu0 0.0
    %639 = vmatpush2.msra.mxu0 %v574
    %640 = vmatprep.subr.mxu0 0.0
    %641 = vmatpush2.msra.mxu0 %v573
    %642 = vmatprep.subr.mxu0 0.0
    %643 = vmatpush2.msra.mxu0 %v572
    %644 = vmatprep.subr.mxu0 0.0
    %645 = vmatpush2.msra.mxu0 %v571
    %646 = vmatprep.subr.mxu0 0.0
    %647 = vmatpush2.msra.mxu0 %v570
    %648 = vmatprep.subr.mxu0 0.0
    %649 = vmatpush2.msra.mxu0 %v569
    %650 = vmatprep.subr.mxu0 0.0
    %651 = vmatpush2.msra.mxu0 %v568
    %652 = vmatprep.subr.mxu0 0.0
    %653 = vmatpush2.msra.mxu0 %v567
    %654 = vmatprep.subr.mxu0 0.0
    %655 = vmatpush2.msra.mxu0 %v566
    %656 = vmatprep.subr.mxu0 0.0
    %657 = vmatpush2.msra.mxu0 %v565
    %658 = vmatprep.mubr.f32.mxu0 %v591
    %659 = vmatmul.mubr.f32.gmra.mxu0 %v590
    %v660 = vpop.f32.mrf.mxu0
    %v661 = vadd.f32 0.0, %v660
    %v662 = vpop.f32.mrf.mxu0
    %663 = vdwg.mxu0
    %v664 = vlaneseq
    %v665 = vshrl.u32 %v664, 7
    %v666 = vsub.s32 0, %v665
    %v667 = vrot.slane %v581, %v666
    %v668 = vadd.f32 %v667, %v661
    %669 = vst.msk [vmem:[#allocation3] sm:$0x3] %vm518, %v668
    // Predicated region
    $region18: #{pointnet_pp_forward.3} parent=1 // pred_check
      _
    $region19: #{pointnet_pp_forward.3} parent=1 // pred_check_branch
      %671 = sbr.rel (0) target = $region21
    $region20: #{pointnet_pp_forward.3} parent=1 // pred_region
      %s673 = ssub.s32 32, 32
      %674 = vsyncadd [#allocation4], %s673
      %s676 = sshll.u32 [#allocation3], 4
      %s677 = int_to_ptr.vmem [resolvable:$true] %s676
      %679 = dma.vmem_to_hbm [thread:$0]  %s677, 32, %s4, [#allocation4]
    $region21: #{pointnet_pp_forward.3} parent=1 // pred_fallthru
      _
    // Predicated region
    $region22: #{pointnet_pp_forward.3} parent=1 // pred_check
      _
    $region23: #{pointnet_pp_forward.3} parent=1 // pred_check_branch
      %681 = sbr.rel (0) target = $region25
    $region24: #{pointnet_pp_forward.3} parent=1 // pred_region
      %682 = dma.done [#allocation4], 32
    $region25: #{pointnet_pp_forward.3} parent=1 // pred_fallthru
      _
    %683 = vsyncpa [#allocation4], 1

</llo_original>
